<compile_context>
chip_gen: v5e
topology: v5e:2x2
jax: 0.10.0
libtpu: 0.0.40
codegen_flags: <defaults>
</compile_context>

<pallas_src>
import jax
import jax.numpy as jnp
from jax.experimental import pallas as pl
from jax.experimental.pallas import tpu as pltpu

LANE = 128          # lane width: last-dim padding target
BF16_SUBLANE = 16   # bf16 packs 16 rows per (8,128) f32-equivalent vreg tile


def _round_up(x, m):
    return ((x + m - 1) // m) * m


def double_q_kernel(x_ref, w1_ref, b1_ref, w2_ref, b2_ref, w3_ref, b3_ref, out_ref):
    """Fused forward for one batch tile: relu(relu(x@W1+b1)@W2+b2)@W3+b3.

    x / W* are bf16 (MXU operands); accumulation, bias-add and ReLU are f32;
    the final store is bf16 (lane-dense, half the HBM writeback bytes).
    """
    x = x_ref[...]                                                     # (TB, S) bf16

    h1 = jnp.dot(x, w1_ref[...], preferred_element_type=jnp.float32)  # f32 acc
    h1 = jnp.maximum(h1 + b1_ref[...], 0.0)                           # f32 bias/ReLU

    h2 = jnp.dot(h1.astype(w2_ref.dtype), w2_ref[...],
                 preferred_element_type=jnp.float32)
    h2 = jnp.maximum(h2 + b2_ref[...], 0.0)

    q = jnp.dot(h2.astype(w3_ref.dtype), w3_ref[...],
                preferred_element_type=jnp.float32)
    out_ref[...] = (q + b3_ref[...]).astype(out_ref.dtype)            # bf16 store


def _vmem_bytes_estimate(tb, s, padded_params, a_pad):
    """Rough VMEM budget: residents (worst case double-buffered) + pipelined
    bf16 in/out tiles (double-buffered) + f32 hidden activations for one tile."""
    resident = 2 * sum(int(p.size) * p.dtype.itemsize for p in padded_params)
    io = 2 * (tb * s * 2 + tb * a_pad * 2)
    hidden = 2 * tb * max(int(p.shape[1]) for p in padded_params[0::2]) * 4
    return resident + io + hidden


def double_q_forward(state, padded_params, action_size, *, block_b=2048,
                     min_pallas_batch=65):
    """Run the fused MLP.

    state:          (B, state_size) f32 (or bf16)
    padded_params:  lane-padded params from pad_params_for_tpu()
    returns:        (B, action_size) f32
    """
    w1, b1, w2, b2, w3, b3 = padded_params
    B, S = state.shape
    a_pad = w3.shape[1]

    # Small batches (RL action selection): pallas_call dispatch + pad/slice dominate
    # end-to-end latency; XLA fuses a 3-layer 64-wide MLP at least as fast.
    if B < min_pallas_batch:
        xb = state.astype(jnp.bfloat16)
        h1 = jnp.maximum(jnp.dot(xb, w1, preferred_element_type=jnp.float32) + b1, 0.0)
        h2 = jnp.maximum(jnp.dot(h1.astype(jnp.bfloat16), w2,
                                 preferred_element_type=jnp.float32) + b2, 0.0)
        q = jnp.dot(h2.astype(jnp.bfloat16), w3,
                    preferred_element_type=jnp.float32) + b3
        return q[:, :action_size]

    # Batch tile: large (up to block_b) to amortize ~0.35 us/step grid overhead,
    # multiple of 16 rows (bf16 sublane pack).  Guarantee >= 2 grid steps when the
    # batch allows it so the "parallel" axis actually shards across v7x's two TCs.
    tb = min(block_b, _round_up(B, BF16_SUBLANE))
    b_pad = _round_up(B, tb)
    if b_pad // tb == 1 and b_pad >= 2 * BF16_SUBLANE:
        tb = _round_up(b_pad // 2, BF16_SUBLANE)
        b_pad = _round_up(B, tb)

    x = state.astype(jnp.bfloat16)
    if b_pad != B:
        x = jnp.pad(x, ((0, b_pad - B), (0, 0)))
    # NOTE: state_size (K of the first matmul) is deliberately NOT padded to 128;
    # the kernel is overhead/HBM-bound, not MXU-bound, and padding would 16x the read.

    h1p, h2p = w1.shape[1], w2.shape[1]
    flops = 2 * b_pad * (S * h1p + h1p * h2p + h2p * a_pad)
    bytes_accessed = (int(x.size) * 2 + b_pad * a_pad * 2 +
                      sum(int(p.size) * p.dtype.itemsize for p in padded_params))
    cost = pl.CostEstimate(flops=flops, transcendentals=0,
                           bytes_accessed=bytes_accessed)

    cp_kwargs = {"dimension_semantics": ("parallel",)}   # megacore shard on v7x
    vmem_est = _vmem_bytes_estimate(tb, S, padded_params, a_pad)
    if vmem_est > 32 * 1024 * 1024:
        # TODO(synk): if residents ever approach v7x's 64 MiB physical VMEM, add a
        # K-tiled "arbitrary" reduction axis over the hidden dim instead of keeping
        # full-width W2/W3 resident.
        cp_kwargs["vmem_limit_bytes"] = min(int(vmem_est), 64 * 1024 * 1024)

    def _call(single_buffer_weights):
        if single_buffer_weights:
            # Weight/bias block index never changes -> one pipeline buffer suffices.
            resident = lambda a: pl.BlockSpec(a.shape, lambda i: (0, 0),
                                              pipeline_mode=pl.Buffered(1))
        else:
            resident = lambda a: pl.BlockSpec(a.shape, lambda i: (0, 0))
        return pl.pallas_call(
            double_q_kernel,
            out_shape=jax.ShapeDtypeStruct((b_pad, a_pad), jnp.bfloat16),
            grid=(b_pad // tb,),
            in_specs=[
                pl.BlockSpec((tb, S), lambda i: (i, 0)),   # state tile (pipelined)
                resident(w1), resident(b1),
                resident(w2), resident(b2),
                resident(w3), resident(b3),
            ],
            out_specs=pl.BlockSpec((tb, a_pad), lambda i: (i, 0)),
            compiler_params=pltpu.CompilerParams(**cp_kwargs),
            cost_estimate=cost,
        )(x, w1, b1, w2, b2, w3, b3)

    try:
        out = _call(True)
    except Exception:
        # Fallback for jax versions where Buffered(1) resident specs don't lower.
        out = _call(False)

    # Strip batch / action-dim padding; upcast to f32 outside the kernel so the
    # dominant HBM write stream stays bf16.
    return out[:B, :action_size].astype(jnp.float32)


def init_params(key, state_size, action_size, fc1_units=64, fc2_units=64):
    """PyTorch nn.Linear default init (U(-1/sqrt(fan_in), +)), stored as (in, out), f32."""
    ks = jax.random.split(key, 6)

    def linear(kw, kb, fan_in, fan_out):
        bound = 1.0 / jnp.sqrt(fan_in)
        w = jax.random.uniform(kw, (fan_in, fan_out), jnp.float32, -bound, bound)
        b = jax.random.uniform(kb, (1, fan_out), jnp.float32, -bound, bound)
        return w, b

    w1, b1 = linear(ks[0], ks[1], state_size, fc1_units)
    w2, b2 = linear(ks[2], ks[3], fc1_units, fc2_units)
    w3, b3 = linear(ks[4], ks[5], fc2_units, action_size)
    return (w1, b1, w2, b2, w3, b3)


def pad_params_for_tpu(params_f32):
    """Zero-pad hidden/output widths to 128 lanes; weights -> bf16, biases stay f32."""
    w1, b1, w2, b2, w3, b3 = params_f32
    s = w1.shape[0]
    h1, h2, a = w1.shape[1], w2.shape[1], w3.shape[1]
    h1p, h2p, ap = _round_up(h1, LANE), _round_up(h2, LANE), _round_up(a, LANE)

    def pad2(m, rows, cols):
        return jnp.pad(m, ((0, rows - m.shape[0]), (0, cols - m.shape[1])))

    w1p = pad2(w1, s, h1p).astype(jnp.bfloat16)
    w2p = pad2(w2, h1p, h2p).astype(jnp.bfloat16)
    w3p = pad2(w3, h2p, ap).astype(jnp.bfloat16)
    b1p = pad2(b1, 1, h1p)
    b2p = pad2(b2, 1, h2p)
    b3p = pad2(b3, 1, ap)
    return (w1p, b1p, w2p, b2p, w3p, b3p)


def reference_forward_bf16(state, params_f32):
    """Plain-JAX reference using the same bf16-operand / f32-accumulate recipe."""
    w1, b1, w2, b2, w3, b3 = params_f32
    bf = jnp.bfloat16
    x = state.astype(bf)
    h1 = jnp.maximum(
        jnp.dot(x, w1.astype(bf), preferred_element_type=jnp.float32) + b1, 0.0)
    h2 = jnp.maximum(
        jnp.dot(h1.astype(bf), w2.astype(bf), preferred_element_type=jnp.float32) + b2, 0.0)
    return jnp.dot(h2.astype(bf), w3.astype(bf), preferred_element_type=jnp.float32) + b3


def reference_forward_f32(state, params_f32):
    """All-f32 reference matching the PyTorch nn.Linear forward semantics."""
    w1, b1, w2, b2, w3, b3 = params_f32
    h1 = jnp.maximum(state @ w1 + b1, 0.0)
    h2 = jnp.maximum(h1 @ w2 + b2, 0.0)
    return h2 @ w3 + b3


if __name__ == "__main__":
    key = jax.random.PRNGKey(0)
    k_params, k_state = jax.random.split(key)

    state_size = 8
    action_size = 4
    params = init_params(k_params, state_size, action_size, fc1_units=64, fc2_units=64)
    padded_params = pad_params_for_tpu(params)

    # Training-sized batch -> Pallas kernel path (>= 2 grid steps so megacore shards it).
    batch = 256
    state = jax.random.normal(k_state, (batch, state_size), jnp.float32)
    out = jax.block_until_ready(double_q_forward(state, padded_params, action_size))
    assert out.shape == (batch, action_size), out.shape

    # Tight check: same bf16-operand recipe, rounded to the kernel's bf16 output store.
    ref_bf = reference_forward_bf16(state, params).astype(jnp.bfloat16).astype(jnp.float32)
    assert jnp.allclose(out, ref_bf, atol=5e-3, rtol=5e-3), "mismatch vs bf16 reference"

    # Loose check: true f32 forward (PyTorch nn.Linear parity modulo bf16 MXU operands).
    ref_f32 = reference_forward_f32(state, params)
    assert jnp.allclose(out, ref_f32, atol=5e-2, rtol=5e-2), "mismatch vs f32 reference"

    # Small-batch action-selection path (bypasses the kernel -> fused XLA).
    small = jax.block_until_ready(double_q_forward(state[:2], padded_params, action_size))
    assert small.shape == (2, action_size), small.shape
    assert jnp.allclose(small, out[:2], atol=5e-3, rtol=5e-3), "small-batch path mismatch"

    print("KERNEL_OK")
</pallas_src>

<mosaic_0001>
module attributes {stable_mosaic.version = 11 : i64} {
  func.func @double_q_kernel(%arg0: i32, %arg1: memref<128x8xbf16, #tpu.memory_space<vmem>>, %arg2: memref<8x128xbf16, #tpu.memory_space<vmem>>, %arg3: memref<1x128xf32, #tpu.memory_space<vmem>>, %arg4: memref<128x128xbf16, #tpu.memory_space<vmem>>, %arg5: memref<1x128xf32, #tpu.memory_space<vmem>>, %arg6: memref<128x128xbf16, #tpu.memory_space<vmem>>, %arg7: memref<1x128xf32, #tpu.memory_space<vmem>>, %arg8: memref<128x128xbf16, #tpu.memory_space<vmem>>) attributes {dimension_semantics = [#tpu.dimension_semantics<parallel>], iteration_bounds = array<i64: 2>, scalar_prefetch = 0 : i64, scratch_operands = 0 : i64, tpu.core_type = #tpu.core_type<tc>, window_params = [{transform_indices = @transform_0, window_bounds = array<i64: 128, 8>}, {pipeline_mode = #tpu.pipeline_mode<synchronous>, transform_indices = @transform_1, window_bounds = array<i64: 8, 128>}, {pipeline_mode = #tpu.pipeline_mode<synchronous>, transform_indices = @transform_2, window_bounds = array<i64: 1, 128>}, {pipeline_mode = #tpu.pipeline_mode<synchronous>, transform_indices = @transform_3, window_bounds = array<i64: 128, 128>}, {pipeline_mode = #tpu.pipeline_mode<synchronous>, transform_indices = @transform_4, window_bounds = array<i64: 1, 128>}, {pipeline_mode = #tpu.pipeline_mode<synchronous>, transform_indices = @transform_5, window_bounds = array<i64: 128, 128>}, {pipeline_mode = #tpu.pipeline_mode<synchronous>, transform_indices = @transform_6, window_bounds = array<i64: 1, 128>}, {transform_indices = @transform_7, window_bounds = array<i64: 128, 128>}]} {
    %c0 = arith.constant 0 : index
    %c0_0 = arith.constant 0 : index
    %0 = vector.load %arg1[%c0, %c0_0] : memref<128x8xbf16, #tpu.memory_space<vmem>>, vector<128x8xbf16>
    %c0_1 = arith.constant 0 : index
    %c0_2 = arith.constant 0 : index
    %1 = vector.load %arg2[%c0_1, %c0_2] : memref<8x128xbf16, #tpu.memory_space<vmem>>, vector<8x128xbf16>
    %cst = arith.constant dense<0.000000e+00> : vector<128x128xf32>
    %2 = tpu.matmul %0, %1, %cst {dimension_numbers = #tpu.dot_dimension_numbers<[1], [0], [0], [1], [0, 0, 1, 1], [], []>} : vector<128x8xbf16>, vector<8x128xbf16>, vector<128x128xf32> -> vector<128x128xf32>
    %c0_3 = arith.constant 0 : index
    %c0_4 = arith.constant 0 : index
    %3 = vector.load %arg3[%c0_3, %c0_4] : memref<1x128xf32, #tpu.memory_space<vmem>>, vector<1x128xf32>
    %4 = vector.broadcast %3 : vector<1x128xf32> to vector<128x128xf32>
    %5 = arith.addf %2, %4 : vector<128x128xf32>
    %cst_5 = arith.constant 0.000000e+00 : f32
    %6 = vector.broadcast %cst_5 : f32 to vector<128x128xf32>
    %7 = arith.maximumf %5, %6 : vector<128x128xf32>
    %8 = arith.truncf %7 : vector<128x128xf32> to vector<128x128xbf16>
    %c0_6 = arith.constant 0 : index
    %c0_7 = arith.constant 0 : index
    %9 = vector.load %arg4[%c0_6, %c0_7] : memref<128x128xbf16, #tpu.memory_space<vmem>>, vector<128x128xbf16>
    %cst_8 = arith.constant dense<0.000000e+00> : vector<128x128xf32>
    %10 = tpu.matmul %8, %9, %cst_8 {dimension_numbers = #tpu.dot_dimension_numbers<[1], [0], [0], [1], [0, 0, 1, 1], [], []>} : vector<128x128xbf16>, vector<128x128xbf16>, vector<128x128xf32> -> vector<128x128xf32>
    %c0_9 = arith.constant 0 : index
    %c0_10 = arith.constant 0 : index
    %11 = vector.load %arg5[%c0_9, %c0_10] : memref<1x128xf32, #tpu.memory_space<vmem>>, vector<1x128xf32>
    %12 = vector.broadcast %11 : vector<1x128xf32> to vector<128x128xf32>
    %13 = arith.addf %10, %12 : vector<128x128xf32>
    %cst_11 = arith.constant 0.000000e+00 : f32
    %14 = vector.broadcast %cst_11 : f32 to vector<128x128xf32>
    %15 = arith.maximumf %13, %14 : vector<128x128xf32>
    %16 = arith.truncf %15 : vector<128x128xf32> to vector<128x128xbf16>
    %c0_12 = arith.constant 0 : index
    %c0_13 = arith.constant 0 : index
    %17 = vector.load %arg6[%c0_12, %c0_13] : memref<128x128xbf16, #tpu.memory_space<vmem>>, vector<128x128xbf16>
    %cst_14 = arith.constant dense<0.000000e+00> : vector<128x128xf32>
    %18 = tpu.matmul %16, %17, %cst_14 {dimension_numbers = #tpu.dot_dimension_numbers<[1], [0], [0], [1], [0, 0, 1, 1], [], []>} : vector<128x128xbf16>, vector<128x128xbf16>, vector<128x128xf32> -> vector<128x128xf32>
    %c0_15 = arith.constant 0 : index
    %c0_16 = arith.constant 0 : index
    %19 = vector.load %arg7[%c0_15, %c0_16] : memref<1x128xf32, #tpu.memory_space<vmem>>, vector<1x128xf32>
    %20 = vector.broadcast %19 : vector<1x128xf32> to vector<128x128xf32>
    %21 = arith.addf %18, %20 : vector<128x128xf32>
    %22 = arith.truncf %21 : vector<128x128xf32> to vector<128x128xbf16>
    %c0_17 = arith.constant 0 : index
    %c0_18 = arith.constant 0 : index
    %23 = vector.load %arg8[%c0_17, %c0_18] : memref<128x128xbf16, #tpu.memory_space<vmem>>, vector<128x128xbf16>
    tpu.vector_store %arg8[%c0_17, %c0_18], %22 {strides = array<i32>} : memref<128x128xbf16, #tpu.memory_space<vmem>>, vector<128x128xbf16>,
    return
  }
  func.func @transform_0(%arg0: i32) -> (i32, i32) {
    %c0_i32 = arith.constant 0 : i32
    %c0_i32_0 = arith.constant 0 : i32
    return %arg0, %c0_i32 : i32, i32
  }
  func.func @transform_1(%arg0: i32) -> (i32, i32) {
    %c0_i32 = arith.constant 0 : i32
    %c0_i32_0 = arith.constant 0 : i32
    %c0_i32_1 = arith.constant 0 : i32
    return %c0_i32, %c0_i32_0 : i32, i32
  }
  func.func @transform_2(%arg0: i32) -> (i32, i32) {
    %c0_i32 = arith.constant 0 : i32
    %c0_i32_0 = arith.constant 0 : i32
    %c0_i32_1 = arith.constant 0 : i32
    return %c0_i32, %c0_i32_0 : i32, i32
  }
  func.func @transform_3(%arg0: i32) -> (i32, i32) {
    %c0_i32 = arith.constant 0 : i32
    %c0_i32_0 = arith.constant 0 : i32
    %c0_i32_1 = arith.constant 0 : i32
    return %c0_i32, %c0_i32_0 : i32, i32
  }
  func.func @transform_4(%arg0: i32) -> (i32, i32) {
    %c0_i32 = arith.constant 0 : i32
    %c0_i32_0 = arith.constant 0 : i32
    %c0_i32_1 = arith.constant 0 : i32
    return %c0_i32, %c0_i32_0 : i32, i32
  }
  func.func @transform_5(%arg0: i32) -> (i32, i32) {
    %c0_i32 = arith.constant 0 : i32
    %c0_i32_0 = arith.constant 0 : i32
    %c0_i32_1 = arith.constant 0 : i32
    return %c0_i32, %c0_i32_0 : i32, i32
  }
  func.func @transform_6(%arg0: i32) -> (i32, i32) {
    %c0_i32 = arith.constant 0 : i32
    %c0_i32_0 = arith.constant 0 : i32
    %c0_i32_1 = arith.constant 0 : i32
    return %c0_i32, %c0_i32_0 : i32, i32
  }
  func.func @transform_7(%arg0: i32) -> (i32, i32) {
    %c0_i32 = arith.constant 0 : i32
    %c0_i32_0 = arith.constant 0 : i32
    return %arg0, %c0_i32 : i32, i32
  }
}

module attributes {stable_mosaic.version = 11 : i64} {
  func.func @double_q_kernel(%arg0: i32, %arg1: memref<128x8xbf16, #tpu.memory_space<vmem>>, %arg2: memref<8x128xbf16, #tpu.memory_space<vmem>>, %arg3: memref<1x128xf32, #tpu.memory_space<vmem>>, %arg4: memref<128x128xbf16, #tpu.memory_space<vmem>>, %arg5: memref<1x128xf32, #tpu.memory_space<vmem>>, %arg6: memref<128x128xbf16, #tpu.memory_space<vmem>>, %arg7: memref<1x128xf32, #tpu.memory_space<vmem>>, %arg8: memref<128x128xbf16, #tpu.memory_space<vmem>>) attributes {dimension_semantics = [#tpu.dimension_semantics<parallel>], iteration_bounds = array<i64: 2>, scalar_prefetch = 0 : i64, scratch_operands = 0 : i64, tpu.core_type = #tpu.core_type<tc>, window_params = [{transform_indices = @transform_0, window_bounds = array<i64: 128, 8>}, {pipeline_mode = #tpu.pipeline_mode<synchronous>, transform_indices = @transform_1, window_bounds = array<i64: 8, 128>}, {pipeline_mode = #tpu.pipeline_mode<synchronous>, transform_indices = @transform_2, window_bounds = array<i64: 1, 128>}, {pipeline_mode = #tpu.pipeline_mode<synchronous>, transform_indices = @transform_3, window_bounds = array<i64: 128, 128>}, {pipeline_mode = #tpu.pipeline_mode<synchronous>, transform_indices = @transform_4, window_bounds = array<i64: 1, 128>}, {pipeline_mode = #tpu.pipeline_mode<synchronous>, transform_indices = @transform_5, window_bounds = array<i64: 128, 128>}, {pipeline_mode = #tpu.pipeline_mode<synchronous>, transform_indices = @transform_6, window_bounds = array<i64: 1, 128>}, {transform_indices = @transform_7, window_bounds = array<i64: 128, 128>}]} {
    %c0 = arith.constant 0 : index
    %c0_0 = arith.constant 0 : index
    %0 = vector.load %arg1[%c0, %c0_0] : memref<128x8xbf16, #tpu.memory_space<vmem>>, vector<128x8xbf16>
    %c0_1 = arith.constant 0 : index
    %c0_2 = arith.constant 0 : index
    %1 = vector.load %arg2[%c0_1, %c0_2] : memref<8x128xbf16, #tpu.memory_space<vmem>>, vector<8x128xbf16>
    %cst = arith.constant dense<0.000000e+00> : vector<128x128xf32>
    %2 = tpu.matmul %0, %1, %cst {dimension_numbers = #tpu.dot_dimension_numbers<[1], [0], [0], [1], [0, 0, 1, 1], [], []>} : vector<128x8xbf16>, vector<8x128xbf16>, vector<128x128xf32> -> vector<128x128xf32>
    %c0_3 = arith.constant 0 : index
    %c0_4 = arith.constant 0 : index
    %3 = vector.load %arg3[%c0_3, %c0_4] : memref<1x128xf32, #tpu.memory_space<vmem>>, vector<1x128xf32>
    %4 = vector.broadcast %3 : vector<1x128xf32> to vector<128x128xf32>
    %5 = arith.addf %2, %4 : vector<128x128xf32>
    %cst_5 = arith.constant 0.000000e+00 : f32
    %6 = vector.broadcast %cst_5 : f32 to vector<128x128xf32>
    %7 = arith.maximumf %5, %6 : vector<128x128xf32>
    %8 = arith.truncf %7 : vector<128x128xf32> to vector<128x128xbf16>
    %c0_6 = arith.constant 0 : index
    %c0_7 = arith.constant 0 : index
    %9 = vector.load %arg4[%c0_6, %c0_7] : memref<128x128xbf16, #tpu.memory_space<vmem>>, vector<128x128xbf16>
    %cst_8 = arith.constant dense<0.000000e+00> : vector<128x128xf32>
    %10 = tpu.matmul %8, %9, %cst_8 {dimension_numbers = #tpu.dot_dimension_numbers<[1], [0], [0], [1], [0, 0, 1, 1], [], []>} : vector<128x128xbf16>, vector<128x128xbf16>, vector<128x128xf32> -> vector<128x128xf32>
    %c0_9 = arith.constant 0 : index
    %c0_10 = arith.constant 0 : index
    %11 = vector.load %arg5[%c0_9, %c0_10] : memref<1x128xf32, #tpu.memory_space<vmem>>, vector<1x128xf32>
    %12 = vector.broadcast %11 : vector<1x128xf32> to vector<128x128xf32>
    %13 = arith.addf %10, %12 : vector<128x128xf32>
    %cst_11 = arith.constant 0.000000e+00 : f32
    %14 = vector.broadcast %cst_11 : f32 to vector<128x128xf32>
    %15 = arith.maximumf %13, %14 : vector<128x128xf32>
    %16 = arith.truncf %15 : vector<128x128xf32> to vector<128x128xbf16>
    %c0_12 = arith.constant 0 : index
    %c0_13 = arith.constant 0 : index
    %17 = vector.load %arg6[%c0_12, %c0_13] : memref<128x128xbf16, #tpu.memory_space<vmem>>, vector<128x128xbf16>
    %cst_14 = arith.constant dense<0.000000e+00> : vector<128x128xf32>
    %18 = tpu.matmul %16, %17, %cst_14 {dimension_numbers = #tpu.dot_dimension_numbers<[1], [0], [0], [1], [0, 0, 1, 1], [], []>} : vector<128x128xbf16>, vector<128x128xbf16>, vector<128x128xf32> -> vector<128x128xf32>
    %c0_15 = arith.constant 0 : index
    %c0_16 = arith.constant 0 : index
    %19 = vector.load %arg7[%c0_15, %c0_16] : memref<1x128xf32, #tpu.memory_space<vmem>>, vector<1x128xf32>
    %20 = vector.broadcast %19 : vector<1x128xf32> to vector<128x128xf32>
    %21 = arith.addf %18, %20 : vector<128x128xf32>
    %22 = arith.truncf %21 : vector<128x128xf32> to vector<128x128xbf16>
    %c0_17 = arith.constant 0 : index
    %c0_18 = arith.constant 0 : index
    %23 = vector.load %arg8[%c0_17, %c0_18] : memref<128x128xbf16, #tpu.memory_space<vmem>>, vector<128x128xbf16>
    tpu.vector_store %arg8[%c0_17, %c0_18], %22 {strides = array<i32>} : memref<128x128xbf16, #tpu.memory_space<vmem>>, vector<128x128xbf16>,
    return
  }
  func.func @transform_0(%arg0: i32) -> (i32, i32) {
    %c0_i32 = arith.constant 0 : i32
    %c0_i32_0 = arith.constant 0 : i32
    return %arg0, %c0_i32 : i32, i32
  }
  func.func @transform_1(%arg0: i32) -> (i32, i32) {
    %c0_i32 = arith.constant 0 : i32
    %c0_i32_0 = arith.constant 0 : i32
    %c0_i32_1 = arith.constant 0 : i32
    return %c0_i32, %c0_i32_0 : i32, i32
  }
  func.func @transform_2(%arg0: i32) -> (i32, i32) {
    %c0_i32 = arith.constant 0 : i32
    %c0_i32_0 = arith.constant 0 : i32
    %c0_i32_1 = arith.constant 0 : i32
    return %c0_i32, %c0_i32_0 : i32, i32
  }
  func.func @transform_3(%arg0: i32) -> (i32, i32) {
    %c0_i32 = arith.constant 0 : i32
    %c0_i32_0 = arith.constant 0 : i32
    %c0_i32_1 = arith.constant 0 : i32
    return %c0_i32, %c0_i32_0 : i32, i32
  }
  func.func @transform_4(%arg0: i32) -> (i32, i32) {
    %c0_i32 = arith.constant 0 : i32
    %c0_i32_0 = arith.constant 0 : i32
    %c0_i32_1 = arith.constant 0 : i32
    return %c0_i32, %c0_i32_0 : i32, i32
  }
  func.func @transform_5(%arg0: i32) -> (i32, i32) {
    %c0_i32 = arith.constant 0 : i32
    %c0_i32_0 = arith.constant 0 : i32
    %c0_i32_1 = arith.constant 0 : i32
    return %c0_i32, %c0_i32_0 : i32, i32
  }
  func.func @transform_6(%arg0: i32) -> (i32, i32) {
    %c0_i32 = arith.constant 0 : i32
    %c0_i32_0 = arith.constant 0 : i32
    %c0_i32_1 = arith.constant 0 : i32
    return %c0_i32, %c0_i32_0 : i32, i32
  }
  func.func @transform_7(%arg0: i32) -> (i32, i32) {
    %c0_i32 = arith.constant 0 : i32
    %c0_i32_0 = arith.constant 0 : i32
    return %arg0, %c0_i32 : i32, i32
  }
}

</mosaic_0001>

<llo_original>
// kernel: tpu_custom_call.1
$region0: #{tpu_custom_call.1}
  #allocation0 [shape = 'u32[]', space=smem, size = 0x4, offset = 0x4, fixed_abs, tag = 'smem constant byte address 0x4 - core index']
  #allocation1 [shape = 'u32[72,128]{1,0:T(1,128)}', space=vmem, size = 0x9000, scoped, tag = 'internal scratch']
  %s0 = inlined_call_operand.vmem [shape: bf16[256,8], index: 0, kind: input, shape index: {}]
  %s1 = inlined_call_operand.vmem [shape: bf16[8,128], index: 1, kind: input, shape index: {}]
  %s2 = inlined_call_operand.vmem [shape: f32[1,128], index: 2, kind: input, shape index: {}]
  %s3 = inlined_call_operand.vmem [shape: bf16[128,128], index: 3, kind: input, shape index: {}]
  %s4 = inlined_call_operand.vmem [shape: f32[1,128], index: 4, kind: input, shape index: {}]
  %s5 = inlined_call_operand.vmem [shape: bf16[128,128], index: 5, kind: input, shape index: {}]
  %s6 = inlined_call_operand.vmem [shape: f32[1,128], index: 6, kind: input, shape index: {}]
  %s7 = inlined_call_operand.hbm [shape: bf16[256,128], index: 7, kind: output, shape index: {}]
  %s8 = sld [smem:[#allocation0]]
  $region61: #{tpu_custom_call.1} parent=0
    _
  %s10 = ssub.s32 1, %s8
  %s11 = scalar_select 0, %s10, %s8
  $region1: #{tpu_custom_call.1} parent=0
    #allocation2 [shape = 'u8[65536]{0}', space=vmem, size = 0x10000, scoped, tag = 'output window, operand 0']
    #allocation3 [shape = 's32[2]{0}', space=sflag, size = 0x8, scoped, tag = 'scoped memory for tpu_custom_call.1']
    %12 = vsyncpa [#allocation3], 0
    %s13 = scalar_lea.sflag [#allocation3], 1
    %14 = vsyncpa %s13, 0
    loop: start=0, step=1, limit=4
    $region2: #{tpu_custom_call.1} parent=1 // loop_pre_header
      _
    $region3: #{tpu_custom_call.1} parent=1 // loop_header
      %s16 = sphi 0, %s20
      %p17 = scmp.ge.s32.totalorder %s16, 4
      %s26 = sphi 0, %s28
      %s29 = sphi 0, %s26
      %s30 = sphi 0, %s29
      %s46 = sphi 0, %s30
      %s50 = sphi 0, %s50
      %s52 = sphi 0, %s50
      %s53 = sphi 0, %s52
      %s67 = sphi 0, %s53
      %s71 = sphi 0, %s71
      %s73 = sphi 0, %s71
      %s74 = sphi 0, %s73
      %s88 = sphi 0, %s74
      %s92 = sphi 0, %s92
      %s94 = sphi 0, %s92
      %s95 = sphi 0, %s94
      %s109 = sphi 0, %s95
      %s113 = sphi 0, %s113
      %s115 = sphi 0, %s113
      %s116 = sphi 0, %s115
      %s130 = sphi 0, %s116
      %s134 = sphi 0, %s134
      %s136 = sphi 0, %s134
      %s137 = sphi 0, %s136
      %s151 = sphi 0, %s137
      %s155 = sphi 0, %s155
      %s157 = sphi 0, %s155
      %s158 = sphi 0, %s157
      %s172 = sphi 0, %s158
      %s178 = sphi 0, %s180
      %s181 = sphi 0, %s178
      %s182 = sphi 0, %s181
      %s198 = sphi 0, %s182
    $region4: #{tpu_custom_call.1} parent=1 // loop_header_branch
      %19 = sbr.rel (%p17) target = $region8
    $region5: #{tpu_custom_call.1} parent=1 // loop_body
      %s21 = ssub.s32 %s16, 1
      %s22 = ssub.s32 %s16, 2
      %s23 = sadd.s32 %s16, 1
      %s24 = ssub.s32 %s16, %s23
      %p25 = scmp.eq.s32.totalorder %s24, 0
      %s27 = sadd.s32 %s26, 1
      %s28 = scalar_select %p25, %s26, %s27
      %p31 = pneg %p25
      %p32 = scmp.eq.s32.totalorder %s16, 1
      %p33 = por %p31, %p32
      %p34 = scmp.ne.s32.totalorder %s26, %s29
      %p35 = scmp.eq.s32.totalorder %s16, 0
      %p36 = por %p34, %p35
      %p37 = scmp.ne.s32.totalorder %s26, %s29
      %p38 = scmp.eq.s32.totalorder %s21, 1
      %p39 = por %p37, %p38
      %p40 = scmp.ne.s32.totalorder %s29, %s30
      %p41 = scmp.eq.s32.totalorder %s21, 0
      %p42 = por %p40, %p41
      %p43 = scmp.ne.s32.totalorder %s29, %s30
      %p44 = scmp.eq.s32.totalorder %s22, 1
      %p45 = por %p43, %p44
      %p47 = scmp.ne.s32.totalorder %s30, %s46
      %p48 = scmp.eq.s32.totalorder %s22, 0
      %p49 = por %p47, %p48
      %s51 = sadd.s32 %s50, 1
      %p54 = scmp.eq.s32.totalorder %s16, 1
      %p55 = scmp.ne.s32.totalorder %s50, %s52
      %p56 = scmp.eq.s32.totalorder %s16, 0
      %p57 = por %p55, %p56
      %p58 = scmp.ne.s32.totalorder %s50, %s52
      %p59 = scmp.eq.s32.totalorder %s21, 1
      %p60 = por %p58, %p59
      %p61 = scmp.ne.s32.totalorder %s52, %s53
      %p62 = scmp.eq.s32.totalorder %s21, 0
      %p63 = por %p61, %p62
      %p64 = scmp.ne.s32.totalorder %s52, %s53
      %p65 = scmp.eq.s32.totalorder %s22, 1
      %p66 = por %p64, %p65
      %p68 = scmp.ne.s32.totalorder %s53, %s67
      %p69 = scmp.eq.s32.totalorder %s22, 0
      %p70 = por %p68, %p69
      %s72 = sadd.s32 %s71, 1
      %p75 = scmp.eq.s32.totalorder %s16, 1
      %p76 = scmp.ne.s32.totalorder %s71, %s73
      %p77 = scmp.eq.s32.totalorder %s16, 0
      %p78 = por %p76, %p77
      %p79 = scmp.ne.s32.totalorder %s71, %s73
      %p80 = scmp.eq.s32.totalorder %s21, 1
      %p81 = por %p79, %p80
      %p82 = scmp.ne.s32.totalorder %s73, %s74
      %p83 = scmp.eq.s32.totalorder %s21, 0
      %p84 = por %p82, %p83
      %p85 = scmp.ne.s32.totalorder %s73, %s74
      %p86 = scmp.eq.s32.totalorder %s22, 1
      %p87 = por %p85, %p86
      %p89 = scmp.ne.s32.totalorder %s74, %s88
      %p90 = scmp.eq.s32.totalorder %s22, 0
      %p91 = por %p89, %p90
      %s93 = sadd.s32 %s92, 1
      %p96 = scmp.eq.s32.totalorder %s16, 1
      %p97 = scmp.ne.s32.totalorder %s92, %s94
      %p98 = scmp.eq.s32.totalorder %s16, 0
      %p99 = por %p97, %p98
      %p100 = scmp.ne.s32.totalorder %s92, %s94
      %p101 = scmp.eq.s32.totalorder %s21, 1
      %p102 = por %p100, %p101
      %p103 = scmp.ne.s32.totalorder %s94, %s95
      %p104 = scmp.eq.s32.totalorder %s21, 0
      %p105 = por %p103, %p104
      %p106 = scmp.ne.s32.totalorder %s94, %s95
      %p107 = scmp.eq.s32.totalorder %s22, 1
      %p108 = por %p106, %p107
      %p110 = scmp.ne.s32.totalorder %s95, %s109
      %p111 = scmp.eq.s32.totalorder %s22, 0
      %p112 = por %p110, %p111
      %s114 = sadd.s32 %s113, 1
      %p117 = scmp.eq.s32.totalorder %s16, 1
      %p118 = scmp.ne.s32.totalorder %s113, %s115
      %p119 = scmp.eq.s32.totalorder %s16, 0
      %p120 = por %p118, %p119
      %p121 = scmp.ne.s32.totalorder %s113, %s115
      %p122 = scmp.eq.s32.totalorder %s21, 1
      %p123 = por %p121, %p122
      %p124 = scmp.ne.s32.totalorder %s115, %s116
      %p125 = scmp.eq.s32.totalorder %s21, 0
      %p126 = por %p124, %p125
      %p127 = scmp.ne.s32.totalorder %s115, %s116
      %p128 = scmp.eq.s32.totalorder %s22, 1
      %p129 = por %p127, %p128
      %p131 = scmp.ne.s32.totalorder %s116, %s130
      %p132 = scmp.eq.s32.totalorder %s22, 0
      %p133 = por %p131, %p132
      %s135 = sadd.s32 %s134, 1
      %p138 = scmp.eq.s32.totalorder %s16, 1
      %p139 = scmp.ne.s32.totalorder %s134, %s136
      %p140 = scmp.eq.s32.totalorder %s16, 0
      %p141 = por %p139, %p140
      %p142 = scmp.ne.s32.totalorder %s134, %s136
      %p143 = scmp.eq.s32.totalorder %s21, 1
      %p144 = por %p142, %p143
      %p145 = scmp.ne.s32.totalorder %s136, %s137
      %p146 = scmp.eq.s32.totalorder %s21, 0
      %p147 = por %p145, %p146
      %p148 = scmp.ne.s32.totalorder %s136, %s137
      %p149 = scmp.eq.s32.totalorder %s22, 1
      %p150 = por %p148, %p149
      %p152 = scmp.ne.s32.totalorder %s137, %s151
      %p153 = scmp.eq.s32.totalorder %s22, 0
      %p154 = por %p152, %p153
      %s156 = sadd.s32 %s155, 1
      %p159 = scmp.eq.s32.totalorder %s16, 1
      %p160 = scmp.ne.s32.totalorder %s155, %s157
      %p161 = scmp.eq.s32.totalorder %s16, 0
      %p162 = por %p160, %p161
      %p163 = scmp.ne.s32.totalorder %s155, %s157
      %p164 = scmp.eq.s32.totalorder %s21, 1
      %p165 = por %p163, %p164
      %p166 = scmp.ne.s32.totalorder %s157, %s158
      %p167 = scmp.eq.s32.totalorder %s21, 0
      %p168 = por %p166, %p167
      %p169 = scmp.ne.s32.totalorder %s157, %s158
      %p170 = scmp.eq.s32.totalorder %s22, 1
      %p171 = por %p169, %p170
      %p173 = scmp.ne.s32.totalorder %s158, %s172
      %p174 = scmp.eq.s32.totalorder %s22, 0
      %p175 = por %p173, %p174
      %s176 = ssub.s32 %s16, %s23
      %p177 = scmp.eq.s32.totalorder %s176, 0
      %s179 = sadd.s32 %s178, 1
      %s180 = scalar_select %p177, %s178, %s179
      %p183 = pneg %p177
      %p184 = scmp.eq.s32.totalorder %s16, 1
      %p185 = por %p183, %p184
      %p186 = scmp.ne.s32.totalorder %s178, %s181
      %p187 = scmp.eq.s32.totalorder %s16, 0
      %p188 = por %p186, %p187
      %p189 = scmp.ne.s32.totalorder %s178, %s181
      %p190 = scmp.eq.s32.totalorder %s21, 1
      %p191 = por %p189, %p190
      %p192 = scmp.ne.s32.totalorder %s181, %s182
      %p193 = scmp.eq.s32.totalorder %s21, 0
      %p194 = por %p192, %p193
      %p195 = scmp.ne.s32.totalorder %s181, %s182
      %p196 = scmp.eq.s32.totalorder %s22, 1
      %p197 = por %p195, %p196
      %p199 = scmp.ne.s32.totalorder %s182, %s198
      %p200 = scmp.eq.s32.totalorder %s22, 0
      %p201 = por %p199, %p200
      %p202 = scmp.le.s32.totalorder 1, %s16
      %p203 = scmp.lt.s32.totalorder %s16, 3
      %p204 = pnand %p202, %p203
      %p205 = pneg %p204
      // Predicated region
      $region9: #{tpu_custom_call.1} parent=5 // pred_check
        _
      $region10: #{tpu_custom_call.1} parent=5 // pred_check_branch
        %207 = sbr.rel (%p204) target = $region12
      $region11: #{tpu_custom_call.1} parent=5 // pred_region
        %s208 = ssub.s32 %s16, 1
        // Predicated region
        $region13: #{tpu_custom_call.1} parent=11 // pred_check
          %p209 = pneg %p63
        $region14: #{tpu_custom_call.1} parent=11 // pred_check_branch
          %211 = sbr.rel (%p209) target = $region16
        $region15: #{tpu_custom_call.1} parent=11 // pred_region
          _
        $region16: #{tpu_custom_call.1} parent=11 // pred_fallthru
          _
        // Predicated region
        $region17: #{tpu_custom_call.1} parent=11 // pred_check
          %p212 = pneg %p84
        $region18: #{tpu_custom_call.1} parent=11 // pred_check_branch
          %214 = sbr.rel (%p212) target = $region20
        $region19: #{tpu_custom_call.1} parent=11 // pred_region
          _
        $region20: #{tpu_custom_call.1} parent=11 // pred_fallthru
          _
        // Predicated region
        $region21: #{tpu_custom_call.1} parent=11 // pred_check
          %p215 = pneg %p105
        $region22: #{tpu_custom_call.1} parent=11 // pred_check_branch
          %217 = sbr.rel (%p215) target = $region24
        $region23: #{tpu_custom_call.1} parent=11 // pred_region
          _
        $region24: #{tpu_custom_call.1} parent=11 // pred_fallthru
          _
        // Predicated region
        $region25: #{tpu_custom_call.1} parent=11 // pred_check
          %p218 = pneg %p126
        $region26: #{tpu_custom_call.1} parent=11 // pred_check_branch
          %220 = sbr.rel (%p218) target = $region28
        $region27: #{tpu_custom_call.1} parent=11 // pred_region
          _
        $region28: #{tpu_custom_call.1} parent=11 // pred_fallthru
          _
        // Predicated region
        $region29: #{tpu_custom_call.1} parent=11 // pred_check
          %p221 = pneg %p147
        $region30: #{tpu_custom_call.1} parent=11 // pred_check_branch
          %223 = sbr.rel (%p221) target = $region32
        $region31: #{tpu_custom_call.1} parent=11 // pred_region
          _
        $region32: #{tpu_custom_call.1} parent=11 // pred_fallthru
          _
        // Predicated region
        $region33: #{tpu_custom_call.1} parent=11 // pred_check
          %p224 = pneg %p168
        $region34: #{tpu_custom_call.1} parent=11 // pred_check_branch
          %226 = sbr.rel (%p224) target = $region36
        $region35: #{tpu_custom_call.1} parent=11 // pred_region
          _
        $region36: #{tpu_custom_call.1} parent=11 // pred_fallthru
          _
      $region12: #{tpu_custom_call.1} parent=5 // pred_fallthru
        _
      %p227 = scmp.lt.s32.totalorder %s16, 2
      // Predicated region
      $region37: #{tpu_custom_call.1} parent=5 // pred_check
        %p228 = pneg %p227
      $region38: #{tpu_custom_call.1} parent=5 // pred_check_branch
        %230 = sbr.rel (%p228) target = $region40
      $region39: #{tpu_custom_call.1} parent=5 // pred_region
        // Predicated region
        $region41: #{tpu_custom_call.1} parent=39 // pred_check
          %p231 = pneg %p36
        $region42: #{tpu_custom_call.1} parent=39 // pred_check_branch
          %233 = sbr.rel (%p231) target = $region44
        $region43: #{tpu_custom_call.1} parent=39 // pred_region
          %s234 = smul.u32 16, %s16
          %p235 = scmp.lt.s32.totalorder %s234, 31
          %s236 = scalar_select %p235, %s234, 31
          %s237 = smul.addr %s236, 4
          %s238 = scalar_lea.vmem %s0, %s237
          %s239 = smul.u32 16, %s16
        $region44: #{tpu_custom_call.1} parent=39 // pred_fallthru
          _
      $region40: #{tpu_custom_call.1} parent=5 // pred_fallthru
        _
      %p240 = scmp.le.s32.totalorder 1, %s16
      %p241 = scmp.lt.s32.totalorder %s16, 3
      %p242 = pnand %p240, %p241
      %p243 = pneg %p242
      // Predicated region
      $region45: #{tpu_custom_call.1} parent=5 // pred_check
        _
      $region46: #{tpu_custom_call.1} parent=5 // pred_check_branch
        %245 = sbr.rel (%p242) target = $region48
      $region47: #{tpu_custom_call.1} parent=5 // pred_region
        %s246 = ssub.s32 %s16, 1
        %s247 = smul.u32 16, %s21
        %p248 = scmp.lt.s32.totalorder %s247, 31
        %s249 = scalar_select %p248, %s247, 31
        %s250 = smul.addr %s249, 4
        %s251 = scalar_lea.vmem %s0, %s250
        %p252 = pneg %p42
        %p253 = pneg %p39
        %p254 = pneg %p63
        %p255 = pneg %p60
        %p256 = pneg %p84
        %p257 = pneg %p81
        %p258 = pneg %p105
        %p259 = pneg %p102
        %p260 = pneg %p126
        %p261 = pneg %p123
        %p262 = pneg %p147
        %p263 = pneg %p144
        %p264 = pneg %p168
        %p265 = pneg %p165
        %p266 = pneg %p194
        %p267 = pneg %p191
        %s268 = sand.u32 %s181, 1
        %s269 = scalar_lea.sflag [#allocation3], %s268
        %s270 = sand.u32 %s181, 1
        %s271 = smul.addr %s270, 64
        %s272 = scalar_lea.vmem [#allocation2], %s271
        %s273 = smul.u32 16, %s21
        %p274 = scmp.lt.s32.totalorder %s273, 31
        %s275 = scalar_select %p274, %s273, 31
        %s276 = smul.addr %s275, 4
        %s277 = scalar_lea.vmem %s0, %s276
        %s278 = smul.u32 16, %s21
        %s279 = smul.u32 16, %s21
        %v281 = vld [vmem:[%s277] sm:$0xf]
        %v282 = vld [vmem:[%s277 + $0x4] sm:$0xf]
        %v283 = vld [vmem:[%s277 + $0x8] sm:$0xf]
        %v284 = vld [vmem:[%s277 + $0xc] sm:$0xf]
        %v285 = vld [vmem:[%s277 + $0x10] sm:$0xf]
        %v286 = vld [vmem:[%s277 + $0x14] sm:$0xf]
        %v287 = vld [vmem:[%s277 + $0x18] sm:$0xf]
        %v288 = vld [vmem:[%s277 + $0x1c] sm:$0xf]
        %v289 = vld [vmem:[%s277 + $0x20] sm:$0xf]
        %v290 = vld [vmem:[%s277 + $0x24] sm:$0xf]
        %v291 = vld [vmem:[%s277 + $0x28] sm:$0xf]
        %v292 = vld [vmem:[%s277 + $0x2c] sm:$0xf]
        %v293 = vld [vmem:[%s277 + $0x30] sm:$0xf]
        %v294 = vld [vmem:[%s277 + $0x34] sm:$0xf]
        %v295 = vld [vmem:[%s277 + $0x38] sm:$0xf]
        %v296 = vld [vmem:[%s277 + $0x3c] sm:$0xf]
        %v297 = vld [vmem:[%s1] sm:$0xf]
        %v298 = vld [vmem:[%s2] sm:$0x1]
        %v300 = vperm.slane %v298, 0
        %v318 = vunpack.c.l.b16 %v281
        %v319 = vunpack.c.l.b16 %v282
        %v320 = vunpack.c.l.b16 %v283
        %v321 = vunpack.c.l.b16 %v284
        %v322 = vunpack.c.l.b16 %v285
        %v323 = vunpack.c.l.b16 %v286
        %v324 = vunpack.c.l.b16 %v287
        %v325 = vunpack.c.l.b16 %v288
        %v326 = vunpack.c.l.b16 %v289
        %v327 = vunpack.c.l.b16 %v290
        %v328 = vunpack.c.l.b16 %v291
        %v329 = vunpack.c.l.b16 %v292
        %v330 = vunpack.c.l.b16 %v293
        %v331 = vunpack.c.l.b16 %v294
        %v332 = vunpack.c.l.b16 %v295
        %v333 = vunpack.c.l.b16 %v296
        %v334 = vpack.c.b16 %v319, %v318
        %v335 = vpack.c.b16 %v321, %v320
        %v336 = vpack.c.b16 %v323, %v322
        %v337 = vpack.c.b16 %v325, %v324
        %v338 = vpack.c.b16 %v327, %v326
        %v339 = vpack.c.b16 %v329, %v328
        %v340 = vpack.c.b16 %v331, %v330
        %v341 = vpack.c.b16 %v333, %v332
        %vm342 = vcmask 64512
        %v344 = vsel %vm342, %v334, 0
        %v347 = vsel %vm342, %v335, 0
        %v350 = vsel %vm342, %v336, 0
        %v353 = vsel %vm342, %v337, 0
        %v356 = vsel %vm342, %v338, 0
        %v359 = vsel %vm342, %v339, 0
        %v362 = vsel %vm342, %v340, 0
        %v365 = vsel %vm342, %v341, 0
        %vm367 = vcmask 1043456
        %v369 = vsel %vm367, %v297, 0
        %371 = vmatpush.bf16.msra.mxu0 0
        %372 = vmatpush.bf16.msra.mxu0 0
        %373 = vmatpush.bf16.msra.mxu0 0
        %374 = vmatpush.bf16.msra.mxu0 0
        %375 = vmatpush.bf16.msra.mxu0 0
        %376 = vmatpush.bf16.msra.mxu0 0
        %377 = vmatpush.bf16.msra.mxu0 0
        %378 = vmatpush.bf16.msra.mxu0 %v369
        %379 = vmatmul.bf16.gmra.mxu0 %v344
        %v380 = vpop.f32.mrf.mxu0
        %v381 = vadd.f32 %v300, %v380
        %v382 = vpop.f32.mrf.mxu0
        %v383 = vadd.f32 %v300, %v382
        %384 = vmatmul.bf16.gmra.mxu0 %v347
        %v385 = vpop.f32.mrf.mxu0
        %v386 = vadd.f32 %v300, %v385
        %v387 = vpop.f32.mrf.mxu0
        %v388 = vadd.f32 %v300, %v387
        %389 = vmatmul.bf16.gmra.mxu0 %v350
        %v390 = vpop.f32.mrf.mxu0
        %v391 = vadd.f32 %v300, %v390
        %v392 = vpop.f32.mrf.mxu0
        %v393 = vadd.f32 %v300, %v392
        %394 = vmatmul.bf16.gmra.mxu0 %v353
        %v395 = vpop.f32.mrf.mxu0
        %v396 = vadd.f32 %v300, %v395
        %v397 = vpop.f32.mrf.mxu0
        %v398 = vadd.f32 %v300, %v397
        %399 = vmatmul.bf16.gmra.mxu0 %v356
        %v400 = vpop.f32.mrf.mxu0
        %v401 = vadd.f32 %v300, %v400
        %v402 = vpop.f32.mrf.mxu0
        %v403 = vadd.f32 %v300, %v402
        %404 = vmatmul.bf16.gmra.mxu0 %v359
        %v405 = vpop.f32.mrf.mxu0
        %v406 = vadd.f32 %v300, %v405
        %v407 = vpop.f32.mrf.mxu0
        %v408 = vadd.f32 %v300, %v407
        %409 = vmatmul.bf16.gmra.mxu0 %v362
        %v410 = vpop.f32.mrf.mxu0
        %v411 = vadd.f32 %v300, %v410
        %v412 = vpop.f32.mrf.mxu0
        %v413 = vadd.f32 %v300, %v412
        %414 = vmatmul.bf16.gmra.mxu0 %v365
        %v415 = vpop.f32.mrf.mxu0
        %v416 = vadd.f32 %v300, %v415
        %v417 = vpop.f32.mrf.mxu0
        %v418 = vadd.f32 %v300, %v417
        %419 = vdwg.mxu0
        %v420 = vmax.f32 %v381, 0.0
        %v421 = vmax.f32 %v383, 0.0
        %v422 = vmax.f32 %v386, 0.0
        %v423 = vmax.f32 %v388, 0.0
        %v424 = vmax.f32 %v391, 0.0
        %v425 = vmax.f32 %v393, 0.0
        %v426 = vmax.f32 %v396, 0.0
        %v427 = vmax.f32 %v398, 0.0
        %v428 = vmax.f32 %v401, 0.0
        %v429 = vmax.f32 %v403, 0.0
        %v430 = vmax.f32 %v406, 0.0
        %v431 = vmax.f32 %v408, 0.0
        %v432 = vmax.f32 %v411, 0.0
        %v433 = vmax.f32 %v413, 0.0
        %v434 = vmax.f32 %v416, 0.0
        %v435 = vmax.f32 %v418, 0.0
        %v436 = vpack.c.bf16 %v421, %v420
        %v437 = vpack.c.bf16 %v423, %v422
        %v438 = vpack.c.bf16 %v425, %v424
        %v439 = vpack.c.bf16 %v427, %v426
        %v440 = vpack.c.bf16 %v429, %v428
        %v441 = vpack.c.bf16 %v431, %v430
        %v442 = vpack.c.bf16 %v433, %v432
        %v443 = vpack.c.bf16 %v435, %v434
        %v444 = vld [vmem:[%s3] sm:$0xf]
        %v445 = vld [vmem:[%s3 + $0x4] sm:$0xf]
        %v446 = vld [vmem:[%s3 + $0x8] sm:$0xf]
        %v447 = vld [vmem:[%s3 + $0xc] sm:$0xf]
        %v448 = vld [vmem:[%s3 + $0x10] sm:$0xf]
        %v449 = vld [vmem:[%s3 + $0x14] sm:$0xf]
        %v450 = vld [vmem:[%s3 + $0x18] sm:$0xf]
        %v451 = vld [vmem:[%s3 + $0x1c] sm:$0xf]
        %v452 = vld [vmem:[%s3 + $0x20] sm:$0xf]
        %v453 = vld [vmem:[%s3 + $0x24] sm:$0xf]
        %v454 = vld [vmem:[%s3 + $0x28] sm:$0xf]
        %v455 = vld [vmem:[%s3 + $0x2c] sm:$0xf]
        %v456 = vld [vmem:[%s3 + $0x30] sm:$0xf]
        %v457 = vld [vmem:[%s3 + $0x34] sm:$0xf]
        %v458 = vld [vmem:[%s3 + $0x38] sm:$0xf]
        %v459 = vld [vmem:[%s3 + $0x3c] sm:$0xf]
        %v460 = vld [vmem:[%s4] sm:$0x1]
        %v462 = vperm.slane %v460, 0
        %v480 = vunpack.c.l.b16 %v444
        %v481 = vunpack.c.l.b16 %v445
        %v482 = vunpack.c.l.b16 %v446
        %v483 = vunpack.c.l.b16 %v447
        %v484 = vunpack.c.l.b16 %v448
        %v485 = vunpack.c.l.b16 %v449
        %v486 = vunpack.c.l.b16 %v450
        %v487 = vunpack.c.l.b16 %v451
        %v488 = vunpack.c.l.b16 %v452
        %v489 = vunpack.c.l.b16 %v453
        %v490 = vunpack.c.l.b16 %v454
        %v491 = vunpack.c.l.b16 %v455
        %v492 = vunpack.c.l.b16 %v456
        %v493 = vunpack.c.l.b16 %v457
        %v494 = vunpack.c.l.b16 %v458
        %v495 = vunpack.c.l.b16 %v459
        %v496 = vpack.c.b16 %v481, %v480
        %v497 = vpack.c.b16 %v483, %v482
        %v498 = vpack.c.b16 %v485, %v484
        %v499 = vpack.c.b16 %v487, %v486
        %v500 = vpack.c.b16 %v489, %v488
        %v501 = vpack.c.b16 %v491, %v490
        %v502 = vpack.c.b16 %v493, %v492
        %v503 = vpack.c.b16 %v495, %v494
        %512 = vmatpush.bf16.msra.mxu0 %v503
        %513 = vmatpush.bf16.msra.mxu0 %v502
        %514 = vmatpush.bf16.msra.mxu0 %v501
        %515 = vmatpush.bf16.msra.mxu0 %v500
        %516 = vmatpush.bf16.msra.mxu0 %v499
        %517 = vmatpush.bf16.msra.mxu0 %v498
        %518 = vmatpush.bf16.msra.mxu0 %v497
        %519 = vmatpush.bf16.msra.mxu0 %v496
        %520 = vmatmul.bf16.gmra.mxu0 %v436
        %v521 = vpop.f32.mrf.mxu0
        %v522 = vadd.f32 %v462, %v521
        %v523 = vpop.f32.mrf.mxu0
        %v524 = vadd.f32 %v462, %v523
        %525 = vmatmul.bf16.gmra.mxu0 %v437
        %v526 = vpop.f32.mrf.mxu0
        %v527 = vadd.f32 %v462, %v526
        %v528 = vpop.f32.mrf.mxu0
        %v529 = vadd.f32 %v462, %v528
        %530 = vmatmul.bf16.gmra.mxu0 %v438
        %v531 = vpop.f32.mrf.mxu0
        %v532 = vadd.f32 %v462, %v531
        %v533 = vpop.f32.mrf.mxu0
        %v534 = vadd.f32 %v462, %v533
        %535 = vmatmul.bf16.gmra.mxu0 %v439
        %v536 = vpop.f32.mrf.mxu0
        %v537 = vadd.f32 %v462, %v536
        %v538 = vpop.f32.mrf.mxu0
        %v539 = vadd.f32 %v462, %v538
        %540 = vmatmul.bf16.gmra.mxu0 %v440
        %v541 = vpop.f32.mrf.mxu0
        %v542 = vadd.f32 %v462, %v541
        %v543 = vpop.f32.mrf.mxu0
        %v544 = vadd.f32 %v462, %v543
        %545 = vmatmul.bf16.gmra.mxu0 %v441
        %v546 = vpop.f32.mrf.mxu0
        %v547 = vadd.f32 %v462, %v546
        %v548 = vpop.f32.mrf.mxu0
        %v549 = vadd.f32 %v462, %v548
        %550 = vmatmul.bf16.gmra.mxu0 %v442
        %v551 = vpop.f32.mrf.mxu0
        %v552 = vadd.f32 %v462, %v551
        %v553 = vpop.f32.mrf.mxu0
        %v554 = vadd.f32 %v462, %v553
        %555 = vmatmul.bf16.gmra.mxu0 %v443
        %v556 = vpop.f32.mrf.mxu0
        %v557 = vadd.f32 %v462, %v556
        %v558 = vpop.f32.mrf.mxu0
        %v559 = vadd.f32 %v462, %v558
        %560 = vdwg.mxu0
        %v561 = vmax.f32 %v522, 0.0
        %v562 = vmax.f32 %v524, 0.0
        %v563 = vmax.f32 %v527, 0.0
        %v564 = vmax.f32 %v529, 0.0
        %v565 = vmax.f32 %v532, 0.0
        %v566 = vmax.f32 %v534, 0.0
        %v567 = vmax.f32 %v537, 0.0
        %v568 = vmax.f32 %v539, 0.0
        %v569 = vmax.f32 %v542, 0.0
        %v570 = vmax.f32 %v544, 0.0
        %v571 = vmax.f32 %v547, 0.0
        %v572 = vmax.f32 %v549, 0.0
        %v573 = vmax.f32 %v552, 0.0
        %v574 = vmax.f32 %v554, 0.0
        %v575 = vmax.f32 %v557, 0.0
        %v576 = vmax.f32 %v559, 0.0
        %v577 = vpack.c.bf16 %v562, %v561
        %v578 = vpack.c.bf16 %v564, %v563
        %v579 = vpack.c.bf16 %v566, %v565
        %v580 = vpack.c.bf16 %v568, %v567
        %v581 = vpack.c.bf16 %v570, %v569
        %v582 = vpack.c.bf16 %v572, %v571
        %v583 = vpack.c.bf16 %v574, %v573
        %v584 = vpack.c.bf16 %v576, %v575
        %v585 = vld [vmem:[%s5] sm:$0xf]
        %v586 = vld [vmem:[%s5 + $0x4] sm:$0xf]
        %v587 = vld [vmem:[%s5 + $0x8] sm:$0xf]
        %v588 = vld [vmem:[%s5 + $0xc] sm:$0xf]
        %v589 = vld [vmem:[%s5 + $0x10] sm:$0xf]
        %v590 = vld [vmem:[%s5 + $0x14] sm:$0xf]
        %v591 = vld [vmem:[%s5 + $0x18] sm:$0xf]
        %v592 = vld [vmem:[%s5 + $0x1c] sm:$0xf]
        %v593 = vld [vmem:[%s5 + $0x20] sm:$0xf]
        %v594 = vld [vmem:[%s5 + $0x24] sm:$0xf]
        %v595 = vld [vmem:[%s5 + $0x28] sm:$0xf]
        %v596 = vld [vmem:[%s5 + $0x2c] sm:$0xf]
        %v597 = vld [vmem:[%s5 + $0x30] sm:$0xf]
        %v598 = vld [vmem:[%s5 + $0x34] sm:$0xf]
        %v599 = vld [vmem:[%s5 + $0x38] sm:$0xf]
        %v600 = vld [vmem:[%s5 + $0x3c] sm:$0xf]
        %v601 = vld [vmem:[%s6] sm:$0x1]
        %v603 = vperm.slane %v601, 0
        %v621 = vunpack.c.l.b16 %v585
        %v622 = vunpack.c.l.b16 %v586
        %v623 = vunpack.c.l.b16 %v587
        %v624 = vunpack.c.l.b16 %v588
        %v625 = vunpack.c.l.b16 %v589
        %v626 = vunpack.c.l.b16 %v590
        %v627 = vunpack.c.l.b16 %v591
        %v628 = vunpack.c.l.b16 %v592
        %v629 = vunpack.c.l.b16 %v593
        %v630 = vunpack.c.l.b16 %v594
        %v631 = vunpack.c.l.b16 %v595
        %v632 = vunpack.c.l.b16 %v596
        %v633 = vunpack.c.l.b16 %v597
        %v634 = vunpack.c.l.b16 %v598
        %v635 = vunpack.c.l.b16 %v599
        %v636 = vunpack.c.l.b16 %v600
        %v637 = vpack.c.b16 %v622, %v621
        %v638 = vpack.c.b16 %v624, %v623
        %v639 = vpack.c.b16 %v626, %v625
        %v640 = vpack.c.b16 %v628, %v627
        %v641 = vpack.c.b16 %v630, %v629
        %v642 = vpack.c.b16 %v632, %v631
        %v643 = vpack.c.b16 %v634, %v633
        %v644 = vpack.c.b16 %v636, %v635
        %653 = vmatpush.bf16.msra.mxu0 %v644
        %654 = vmatpush.bf16.msra.mxu0 %v643
        %655 = vmatpush.bf16.msra.mxu0 %v642
        %656 = vmatpush.bf16.msra.mxu0 %v641
        %657 = vmatpush.bf16.msra.mxu0 %v640
        %658 = vmatpush.bf16.msra.mxu0 %v639
        %659 = vmatpush.bf16.msra.mxu0 %v638
        %660 = vmatpush.bf16.msra.mxu0 %v637
        %661 = vmatmul.bf16.gmra.mxu0 %v577
        %v662 = vpop.f32.mrf.mxu0
        %v663 = vadd.f32 %v603, %v662
        %v664 = vpop.f32.mrf.mxu0
        %v665 = vadd.f32 %v603, %v664
        %666 = vmatmul.bf16.gmra.mxu0 %v578
        %v667 = vpop.f32.mrf.mxu0
        %v668 = vadd.f32 %v603, %v667
        %v669 = vpop.f32.mrf.mxu0
        %v670 = vadd.f32 %v603, %v669
        %671 = vmatmul.bf16.gmra.mxu0 %v579
        %v672 = vpop.f32.mrf.mxu0
        %v673 = vadd.f32 %v603, %v672
        %v674 = vpop.f32.mrf.mxu0
        %v675 = vadd.f32 %v603, %v674
        %676 = vmatmul.bf16.gmra.mxu0 %v580
        %v677 = vpop.f32.mrf.mxu0
        %v678 = vadd.f32 %v603, %v677
        %v679 = vpop.f32.mrf.mxu0
        %v680 = vadd.f32 %v603, %v679
        %681 = vmatmul.bf16.gmra.mxu0 %v581
        %v682 = vpop.f32.mrf.mxu0
        %v683 = vadd.f32 %v603, %v682
        %v684 = vpop.f32.mrf.mxu0
        %v685 = vadd.f32 %v603, %v684
        %686 = vmatmul.bf16.gmra.mxu0 %v582
        %v687 = vpop.f32.mrf.mxu0
        %v688 = vadd.f32 %v603, %v687
        %v689 = vpop.f32.mrf.mxu0
        %v690 = vadd.f32 %v603, %v689
        %691 = vmatmul.bf16.gmra.mxu0 %v583
        %v692 = vpop.f32.mrf.mxu0
        %v693 = vadd.f32 %v603, %v692
        %v694 = vpop.f32.mrf.mxu0
        %v695 = vadd.f32 %v603, %v694
        %696 = vmatmul.bf16.gmra.mxu0 %v584
        %v697 = vpop.f32.mrf.mxu0
        %v698 = vadd.f32 %v603, %v697
        %v699 = vpop.f32.mrf.mxu0
        %v700 = vadd.f32 %v603, %v699
        %701 = vdwg.mxu0
        %v702 = vpack.c.bf16 %v663, %v663
        %v703 = vpack.c.bf16 %v665, %v665
        %v704 = vpack.c.bf16 %v668, %v668
        %v705 = vpack.c.bf16 %v670, %v670
        %v706 = vpack.c.bf16 %v673, %v673
        %v707 = vpack.c.bf16 %v675, %v675
        %v708 = vpack.c.bf16 %v678, %v678
        %v709 = vpack.c.bf16 %v680, %v680
        %v710 = vpack.c.bf16 %v683, %v683
        %v711 = vpack.c.bf16 %v685, %v685
        %v712 = vpack.c.bf16 %v688, %v688
        %v713 = vpack.c.bf16 %v690, %v690
        %v714 = vpack.c.bf16 %v693, %v693
        %v715 = vpack.c.bf16 %v695, %v695
        %v716 = vpack.c.bf16 %v698, %v698
        %v717 = vpack.c.bf16 %v700, %v700
        %718 = vst [vmem:[%s272] sm:$0xf] %v702
        %719 = vst [vmem:[%s272 + $0x4] sm:$0xf] %v703
        %720 = vst [vmem:[%s272 + $0x8] sm:$0xf] %v704
        %721 = vst [vmem:[%s272 + $0xc] sm:$0xf] %v705
        %722 = vst [vmem:[%s272 + $0x10] sm:$0xf] %v706
        %723 = vst [vmem:[%s272 + $0x14] sm:$0xf] %v707
        %724 = vst [vmem:[%s272 + $0x18] sm:$0xf] %v708
        %725 = vst [vmem:[%s272 + $0x1c] sm:$0xf] %v709
        %726 = vst [vmem:[%s272 + $0x20] sm:$0xf] %v710
        %727 = vst [vmem:[%s272 + $0x24] sm:$0xf] %v711
        %728 = vst [vmem:[%s272 + $0x28] sm:$0xf] %v712
        %729 = vst [vmem:[%s272 + $0x2c] sm:$0xf] %v713
        %730 = vst [vmem:[%s272 + $0x30] sm:$0xf] %v714
        %731 = vst [vmem:[%s272 + $0x34] sm:$0xf] %v715
        %732 = vst [vmem:[%s272 + $0x38] sm:$0xf] %v716
        %733 = vst [vmem:[%s272 + $0x3c] sm:$0xf] %v717
        %s734 = sand.u32 %s181, 1
        %s735 = scalar_lea.sflag [#allocation3], %s734
        %s736 = sand.u32 %s181, 1
        %s737 = smul.addr %s736, 64
        %s738 = scalar_lea.vmem [#allocation2], %s737
        // Predicated region
        $region49: #{tpu_custom_call.1} parent=47 // pred_check
          %p739 = pneg %p191
        $region50: #{tpu_custom_call.1} parent=47 // pred_check_branch
          %741 = sbr.rel (%p739) target = $region52
        $region51: #{tpu_custom_call.1} parent=47 // pred_region
          %s742 = smul.u32 16, %s21
          %744 = vsyncadd %s735, 0
          %s745 = smul.addr %s742, 4
          %s746 = scalar_lea.hbm %s7, %s745
          %s747 = sshll.u32 %s738, 4
          %s748 = int_to_ptr.vmem [resolvable:$true] %s747
          %s749 = sshll.u32 %s746, 4
          %s750 = int_to_ptr.hbm [resolvable:$true] %s749
          %755 = dma.vmem_to_hbm [thread:$0]  %s748, 1024, %s750, %s735, 64, 64, 4
        $region52: #{tpu_custom_call.1} parent=47 // pred_fallthru
          _
      $region48: #{tpu_custom_call.1} parent=5 // pred_fallthru
        _
      %p756 = scmp.le.s32.totalorder 2, %s16
      // Predicated region
      $region53: #{tpu_custom_call.1} parent=5 // pred_check
        %p757 = pneg %p756
      $region54: #{tpu_custom_call.1} parent=5 // pred_check_branch
        %759 = sbr.rel (%p757) target = $region56
      $region55: #{tpu_custom_call.1} parent=5 // pred_region
        %s760 = ssub.s32 %s16, 2
        // Predicated region
        $region57: #{tpu_custom_call.1} parent=55 // pred_check
          %p761 = pneg %p197
        $region58: #{tpu_custom_call.1} parent=55 // pred_check_branch
          %763 = sbr.rel (%p761) target = $region60
        $region59: #{tpu_custom_call.1} parent=55 // pred_region
          %s764 = sand.u32 %s182, 1
          %s765 = scalar_lea.sflag [#allocation3], %s764
          %s766 = sand.u32 %s182, 1
          %s767 = smul.addr %s766, 64
          %s768 = scalar_lea.vmem [#allocation2], %s767
          %770 = dma.done %s765, 1024
        $region60: #{tpu_custom_call.1} parent=55 // pred_fallthru
          _
      $region56: #{tpu_custom_call.1} parent=5 // pred_fallthru
        _
    $region6: #{tpu_custom_call.1} parent=1 // loop_footer
      %s20 = sadd.s32 1, %s16
    $region7: #{tpu_custom_call.1} parent=1 // loop_footer_branch
      %15 = sbr.rel target = $region3
    $region8: #{tpu_custom_call.1} parent=1 // loop_exit
      _
    %771 = vsyncpa [#allocation3], 1
    %s772 = scalar_lea.sflag [#allocation3], 1
    %773 = vsyncpa %s772, 1

// kernel: tpu_custom_call.1
$region0: #{tpu_custom_call.1}
  #allocation0 [shape = 'u32[]', space=smem, size = 0x4, offset = 0x4, fixed_abs, tag = 'smem constant byte address 0x4 - core index']
  #allocation1 [shape = 'u32[72,128]{1,0:T(1,128)}', space=vmem, size = 0x9000, scoped, tag = 'internal scratch']
  %s0 = inlined_call_operand.vmem [shape: bf16[256,8], index: 0, kind: input, shape index: {}]
  %s1 = inlined_call_operand.vmem [shape: bf16[8,128], index: 1, kind: input, shape index: {}]
  %s2 = inlined_call_operand.vmem [shape: f32[1,128], index: 2, kind: input, shape index: {}]
  %s3 = inlined_call_operand.vmem [shape: bf16[128,128], index: 3, kind: input, shape index: {}]
  %s4 = inlined_call_operand.vmem [shape: f32[1,128], index: 4, kind: input, shape index: {}]
  %s5 = inlined_call_operand.vmem [shape: bf16[128,128], index: 5, kind: input, shape index: {}]
  %s6 = inlined_call_operand.vmem [shape: f32[1,128], index: 6, kind: input, shape index: {}]
  %s7 = inlined_call_operand.hbm [shape: bf16[256,128], index: 7, kind: output, shape index: {}]
  %s8 = sld [smem:[#allocation0]]
  $region61: #{tpu_custom_call.1} parent=0
    _
  %s10 = ssub.s32 1, %s8
  %s11 = scalar_select 0, %s10, %s8
  $region1: #{tpu_custom_call.1} parent=0
    #allocation2 [shape = 'u8[65536]{0}', space=vmem, size = 0x10000, scoped, tag = 'output window, operand 0']
    #allocation3 [shape = 's32[2]{0}', space=sflag, size = 0x8, scoped, tag = 'scoped memory for tpu_custom_call.1']
    %12 = vsyncpa [#allocation3], 0
    %s13 = scalar_lea.sflag [#allocation3], 1
    %14 = vsyncpa %s13, 0
    loop: start=0, step=1, limit=4
    $region2: #{tpu_custom_call.1} parent=1 // loop_pre_header
      _
    $region3: #{tpu_custom_call.1} parent=1 // loop_header
      %s16 = sphi 0, %s20
      %p17 = scmp.ge.s32.totalorder %s16, 4
      %s26 = sphi 0, %s28
      %s29 = sphi 0, %s26
      %s30 = sphi 0, %s29
      %s46 = sphi 0, %s30
      %s50 = sphi 0, %s50
      %s52 = sphi 0, %s50
      %s53 = sphi 0, %s52
      %s67 = sphi 0, %s53
      %s71 = sphi 0, %s71
      %s73 = sphi 0, %s71
      %s74 = sphi 0, %s73
      %s88 = sphi 0, %s74
      %s92 = sphi 0, %s92
      %s94 = sphi 0, %s92
      %s95 = sphi 0, %s94
      %s109 = sphi 0, %s95
      %s113 = sphi 0, %s113
      %s115 = sphi 0, %s113
      %s116 = sphi 0, %s115
      %s130 = sphi 0, %s116
      %s134 = sphi 0, %s134
      %s136 = sphi 0, %s134
      %s137 = sphi 0, %s136
      %s151 = sphi 0, %s137
      %s155 = sphi 0, %s155
      %s157 = sphi 0, %s155
      %s158 = sphi 0, %s157
      %s172 = sphi 0, %s158
      %s178 = sphi 0, %s180
      %s181 = sphi 0, %s178
      %s182 = sphi 0, %s181
      %s198 = sphi 0, %s182
    $region4: #{tpu_custom_call.1} parent=1 // loop_header_branch
      %19 = sbr.rel (%p17) target = $region8
    $region5: #{tpu_custom_call.1} parent=1 // loop_body
      %s21 = ssub.s32 %s16, 1
      %s22 = ssub.s32 %s16, 2
      %s23 = sadd.s32 %s16, 1
      %s24 = ssub.s32 %s16, %s23
      %p25 = scmp.eq.s32.totalorder %s24, 0
      %s27 = sadd.s32 %s26, 1
      %s28 = scalar_select %p25, %s26, %s27
      %p31 = pneg %p25
      %p32 = scmp.eq.s32.totalorder %s16, 1
      %p33 = por %p31, %p32
      %p34 = scmp.ne.s32.totalorder %s26, %s29
      %p35 = scmp.eq.s32.totalorder %s16, 0
      %p36 = por %p34, %p35
      %p37 = scmp.ne.s32.totalorder %s26, %s29
      %p38 = scmp.eq.s32.totalorder %s21, 1
      %p39 = por %p37, %p38
      %p40 = scmp.ne.s32.totalorder %s29, %s30
      %p41 = scmp.eq.s32.totalorder %s21, 0
      %p42 = por %p40, %p41
      %p43 = scmp.ne.s32.totalorder %s29, %s30
      %p44 = scmp.eq.s32.totalorder %s22, 1
      %p45 = por %p43, %p44
      %p47 = scmp.ne.s32.totalorder %s30, %s46
      %p48 = scmp.eq.s32.totalorder %s22, 0
      %p49 = por %p47, %p48
      %s51 = sadd.s32 %s50, 1
      %p54 = scmp.eq.s32.totalorder %s16, 1
      %p55 = scmp.ne.s32.totalorder %s50, %s52
      %p56 = scmp.eq.s32.totalorder %s16, 0
      %p57 = por %p55, %p56
      %p58 = scmp.ne.s32.totalorder %s50, %s52
      %p59 = scmp.eq.s32.totalorder %s21, 1
      %p60 = por %p58, %p59
      %p61 = scmp.ne.s32.totalorder %s52, %s53
      %p62 = scmp.eq.s32.totalorder %s21, 0
      %p63 = por %p61, %p62
      %p64 = scmp.ne.s32.totalorder %s52, %s53
      %p65 = scmp.eq.s32.totalorder %s22, 1
      %p66 = por %p64, %p65
      %p68 = scmp.ne.s32.totalorder %s53, %s67
      %p69 = scmp.eq.s32.totalorder %s22, 0
      %p70 = por %p68, %p69
      %s72 = sadd.s32 %s71, 1
      %p75 = scmp.eq.s32.totalorder %s16, 1
      %p76 = scmp.ne.s32.totalorder %s71, %s73
      %p77 = scmp.eq.s32.totalorder %s16, 0
      %p78 = por %p76, %p77
      %p79 = scmp.ne.s32.totalorder %s71, %s73
      %p80 = scmp.eq.s32.totalorder %s21, 1
      %p81 = por %p79, %p80
      %p82 = scmp.ne.s32.totalorder %s73, %s74
      %p83 = scmp.eq.s32.totalorder %s21, 0
      %p84 = por %p82, %p83
      %p85 = scmp.ne.s32.totalorder %s73, %s74
      %p86 = scmp.eq.s32.totalorder %s22, 1
      %p87 = por %p85, %p86
      %p89 = scmp.ne.s32.totalorder %s74, %s88
      %p90 = scmp.eq.s32.totalorder %s22, 0
      %p91 = por %p89, %p90
      %s93 = sadd.s32 %s92, 1
      %p96 = scmp.eq.s32.totalorder %s16, 1
      %p97 = scmp.ne.s32.totalorder %s92, %s94
      %p98 = scmp.eq.s32.totalorder %s16, 0
      %p99 = por %p97, %p98
      %p100 = scmp.ne.s32.totalorder %s92, %s94
      %p101 = scmp.eq.s32.totalorder %s21, 1
      %p102 = por %p100, %p101
      %p103 = scmp.ne.s32.totalorder %s94, %s95
      %p104 = scmp.eq.s32.totalorder %s21, 0
      %p105 = por %p103, %p104
      %p106 = scmp.ne.s32.totalorder %s94, %s95
      %p107 = scmp.eq.s32.totalorder %s22, 1
      %p108 = por %p106, %p107
      %p110 = scmp.ne.s32.totalorder %s95, %s109
      %p111 = scmp.eq.s32.totalorder %s22, 0
      %p112 = por %p110, %p111
      %s114 = sadd.s32 %s113, 1
      %p117 = scmp.eq.s32.totalorder %s16, 1
      %p118 = scmp.ne.s32.totalorder %s113, %s115
      %p119 = scmp.eq.s32.totalorder %s16, 0
      %p120 = por %p118, %p119
      %p121 = scmp.ne.s32.totalorder %s113, %s115
      %p122 = scmp.eq.s32.totalorder %s21, 1
      %p123 = por %p121, %p122
      %p124 = scmp.ne.s32.totalorder %s115, %s116
      %p125 = scmp.eq.s32.totalorder %s21, 0
      %p126 = por %p124, %p125
      %p127 = scmp.ne.s32.totalorder %s115, %s116
      %p128 = scmp.eq.s32.totalorder %s22, 1
      %p129 = por %p127, %p128
      %p131 = scmp.ne.s32.totalorder %s116, %s130
      %p132 = scmp.eq.s32.totalorder %s22, 0
      %p133 = por %p131, %p132
      %s135 = sadd.s32 %s134, 1
      %p138 = scmp.eq.s32.totalorder %s16, 1
      %p139 = scmp.ne.s32.totalorder %s134, %s136
      %p140 = scmp.eq.s32.totalorder %s16, 0
      %p141 = por %p139, %p140
      %p142 = scmp.ne.s32.totalorder %s134, %s136
      %p143 = scmp.eq.s32.totalorder %s21, 1
      %p144 = por %p142, %p143
      %p145 = scmp.ne.s32.totalorder %s136, %s137
      %p146 = scmp.eq.s32.totalorder %s21, 0
      %p147 = por %p145, %p146
      %p148 = scmp.ne.s32.totalorder %s136, %s137
      %p149 = scmp.eq.s32.totalorder %s22, 1
      %p150 = por %p148, %p149
      %p152 = scmp.ne.s32.totalorder %s137, %s151
      %p153 = scmp.eq.s32.totalorder %s22, 0
      %p154 = por %p152, %p153
      %s156 = sadd.s32 %s155, 1
      %p159 = scmp.eq.s32.totalorder %s16, 1
      %p160 = scmp.ne.s32.totalorder %s155, %s157
      %p161 = scmp.eq.s32.totalorder %s16, 0
      %p162 = por %p160, %p161
      %p163 = scmp.ne.s32.totalorder %s155, %s157
      %p164 = scmp.eq.s32.totalorder %s21, 1
      %p165 = por %p163, %p164
      %p166 = scmp.ne.s32.totalorder %s157, %s158
      %p167 = scmp.eq.s32.totalorder %s21, 0
      %p168 = por %p166, %p167
      %p169 = scmp.ne.s32.totalorder %s157, %s158
      %p170 = scmp.eq.s32.totalorder %s22, 1
      %p171 = por %p169, %p170
      %p173 = scmp.ne.s32.totalorder %s158, %s172
      %p174 = scmp.eq.s32.totalorder %s22, 0
      %p175 = por %p173, %p174
      %s176 = ssub.s32 %s16, %s23
      %p177 = scmp.eq.s32.totalorder %s176, 0
      %s179 = sadd.s32 %s178, 1
      %s180 = scalar_select %p177, %s178, %s179
      %p183 = pneg %p177
      %p184 = scmp.eq.s32.totalorder %s16, 1
      %p185 = por %p183, %p184
      %p186 = scmp.ne.s32.totalorder %s178, %s181
      %p187 = scmp.eq.s32.totalorder %s16, 0
      %p188 = por %p186, %p187
      %p189 = scmp.ne.s32.totalorder %s178, %s181
      %p190 = scmp.eq.s32.totalorder %s21, 1
      %p191 = por %p189, %p190
      %p192 = scmp.ne.s32.totalorder %s181, %s182
      %p193 = scmp.eq.s32.totalorder %s21, 0
      %p194 = por %p192, %p193
      %p195 = scmp.ne.s32.totalorder %s181, %s182
      %p196 = scmp.eq.s32.totalorder %s22, 1
      %p197 = por %p195, %p196
      %p199 = scmp.ne.s32.totalorder %s182, %s198
      %p200 = scmp.eq.s32.totalorder %s22, 0
      %p201 = por %p199, %p200
      %p202 = scmp.le.s32.totalorder 1, %s16
      %p203 = scmp.lt.s32.totalorder %s16, 3
      %p204 = pnand %p202, %p203
      %p205 = pneg %p204
      // Predicated region
      $region9: #{tpu_custom_call.1} parent=5 // pred_check
        _
      $region10: #{tpu_custom_call.1} parent=5 // pred_check_branch
        %207 = sbr.rel (%p204) target = $region12
      $region11: #{tpu_custom_call.1} parent=5 // pred_region
        %s208 = ssub.s32 %s16, 1
        // Predicated region
        $region13: #{tpu_custom_call.1} parent=11 // pred_check
          %p209 = pneg %p63
        $region14: #{tpu_custom_call.1} parent=11 // pred_check_branch
          %211 = sbr.rel (%p209) target = $region16
        $region15: #{tpu_custom_call.1} parent=11 // pred_region
          _
        $region16: #{tpu_custom_call.1} parent=11 // pred_fallthru
          _
        // Predicated region
        $region17: #{tpu_custom_call.1} parent=11 // pred_check
          %p212 = pneg %p84
        $region18: #{tpu_custom_call.1} parent=11 // pred_check_branch
          %214 = sbr.rel (%p212) target = $region20
        $region19: #{tpu_custom_call.1} parent=11 // pred_region
          _
        $region20: #{tpu_custom_call.1} parent=11 // pred_fallthru
          _
        // Predicated region
        $region21: #{tpu_custom_call.1} parent=11 // pred_check
          %p215 = pneg %p105
        $region22: #{tpu_custom_call.1} parent=11 // pred_check_branch
          %217 = sbr.rel (%p215) target = $region24
        $region23: #{tpu_custom_call.1} parent=11 // pred_region
          _
        $region24: #{tpu_custom_call.1} parent=11 // pred_fallthru
          _
        // Predicated region
        $region25: #{tpu_custom_call.1} parent=11 // pred_check
          %p218 = pneg %p126
        $region26: #{tpu_custom_call.1} parent=11 // pred_check_branch
          %220 = sbr.rel (%p218) target = $region28
        $region27: #{tpu_custom_call.1} parent=11 // pred_region
          _
        $region28: #{tpu_custom_call.1} parent=11 // pred_fallthru
          _
        // Predicated region
        $region29: #{tpu_custom_call.1} parent=11 // pred_check
          %p221 = pneg %p147
        $region30: #{tpu_custom_call.1} parent=11 // pred_check_branch
          %223 = sbr.rel (%p221) target = $region32
        $region31: #{tpu_custom_call.1} parent=11 // pred_region
          _
        $region32: #{tpu_custom_call.1} parent=11 // pred_fallthru
          _
        // Predicated region
        $region33: #{tpu_custom_call.1} parent=11 // pred_check
          %p224 = pneg %p168
        $region34: #{tpu_custom_call.1} parent=11 // pred_check_branch
          %226 = sbr.rel (%p224) target = $region36
        $region35: #{tpu_custom_call.1} parent=11 // pred_region
          _
        $region36: #{tpu_custom_call.1} parent=11 // pred_fallthru
          _
      $region12: #{tpu_custom_call.1} parent=5 // pred_fallthru
        _
      %p227 = scmp.lt.s32.totalorder %s16, 2
      // Predicated region
      $region37: #{tpu_custom_call.1} parent=5 // pred_check
        %p228 = pneg %p227
      $region38: #{tpu_custom_call.1} parent=5 // pred_check_branch
        %230 = sbr.rel (%p228) target = $region40
      $region39: #{tpu_custom_call.1} parent=5 // pred_region
        // Predicated region
        $region41: #{tpu_custom_call.1} parent=39 // pred_check
          %p231 = pneg %p36
        $region42: #{tpu_custom_call.1} parent=39 // pred_check_branch
          %233 = sbr.rel (%p231) target = $region44
        $region43: #{tpu_custom_call.1} parent=39 // pred_region
          %s234 = smul.u32 16, %s16
          %p235 = scmp.lt.s32.totalorder %s234, 31
          %s236 = scalar_select %p235, %s234, 31
          %s237 = smul.addr %s236, 4
          %s238 = scalar_lea.vmem %s0, %s237
          %s239 = smul.u32 16, %s16
        $region44: #{tpu_custom_call.1} parent=39 // pred_fallthru
          _
      $region40: #{tpu_custom_call.1} parent=5 // pred_fallthru
        _
      %p240 = scmp.le.s32.totalorder 1, %s16
      %p241 = scmp.lt.s32.totalorder %s16, 3
      %p242 = pnand %p240, %p241
      %p243 = pneg %p242
      // Predicated region
      $region45: #{tpu_custom_call.1} parent=5 // pred_check
        _
      $region46: #{tpu_custom_call.1} parent=5 // pred_check_branch
        %245 = sbr.rel (%p242) target = $region48
      $region47: #{tpu_custom_call.1} parent=5 // pred_region
        %s246 = ssub.s32 %s16, 1
        %s247 = smul.u32 16, %s21
        %p248 = scmp.lt.s32.totalorder %s247, 31
        %s249 = scalar_select %p248, %s247, 31
        %s250 = smul.addr %s249, 4
        %s251 = scalar_lea.vmem %s0, %s250
        %p252 = pneg %p42
        %p253 = pneg %p39
        %p254 = pneg %p63
        %p255 = pneg %p60
        %p256 = pneg %p84
        %p257 = pneg %p81
        %p258 = pneg %p105
        %p259 = pneg %p102
        %p260 = pneg %p126
        %p261 = pneg %p123
        %p262 = pneg %p147
        %p263 = pneg %p144
        %p264 = pneg %p168
        %p265 = pneg %p165
        %p266 = pneg %p194
        %p267 = pneg %p191
        %s268 = sand.u32 %s181, 1
        %s269 = scalar_lea.sflag [#allocation3], %s268
        %s270 = sand.u32 %s181, 1
        %s271 = smul.addr %s270, 64
        %s272 = scalar_lea.vmem [#allocation2], %s271
        %s273 = smul.u32 16, %s21
        %p274 = scmp.lt.s32.totalorder %s273, 31
        %s275 = scalar_select %p274, %s273, 31
        %s276 = smul.addr %s275, 4
        %s277 = scalar_lea.vmem %s0, %s276
        %s278 = smul.u32 16, %s21
        %s279 = smul.u32 16, %s21
        %v281 = vld [vmem:[%s277] sm:$0xf]
        %v282 = vld [vmem:[%s277 + $0x4] sm:$0xf]
        %v283 = vld [vmem:[%s277 + $0x8] sm:$0xf]
        %v284 = vld [vmem:[%s277 + $0xc] sm:$0xf]
        %v285 = vld [vmem:[%s277 + $0x10] sm:$0xf]
        %v286 = vld [vmem:[%s277 + $0x14] sm:$0xf]
        %v287 = vld [vmem:[%s277 + $0x18] sm:$0xf]
        %v288 = vld [vmem:[%s277 + $0x1c] sm:$0xf]
        %v289 = vld [vmem:[%s277 + $0x20] sm:$0xf]
        %v290 = vld [vmem:[%s277 + $0x24] sm:$0xf]
        %v291 = vld [vmem:[%s277 + $0x28] sm:$0xf]
        %v292 = vld [vmem:[%s277 + $0x2c] sm:$0xf]
        %v293 = vld [vmem:[%s277 + $0x30] sm:$0xf]
        %v294 = vld [vmem:[%s277 + $0x34] sm:$0xf]
        %v295 = vld [vmem:[%s277 + $0x38] sm:$0xf]
        %v296 = vld [vmem:[%s277 + $0x3c] sm:$0xf]
        %v297 = vld [vmem:[%s1] sm:$0xf]
        %v298 = vld [vmem:[%s2] sm:$0x1]
        %v300 = vperm.slane %v298, 0
        %v318 = vunpack.c.l.b16 %v281
        %v319 = vunpack.c.l.b16 %v282
        %v320 = vunpack.c.l.b16 %v283
        %v321 = vunpack.c.l.b16 %v284
        %v322 = vunpack.c.l.b16 %v285
        %v323 = vunpack.c.l.b16 %v286
        %v324 = vunpack.c.l.b16 %v287
        %v325 = vunpack.c.l.b16 %v288
        %v326 = vunpack.c.l.b16 %v289
        %v327 = vunpack.c.l.b16 %v290
        %v328 = vunpack.c.l.b16 %v291
        %v329 = vunpack.c.l.b16 %v292
        %v330 = vunpack.c.l.b16 %v293
        %v331 = vunpack.c.l.b16 %v294
        %v332 = vunpack.c.l.b16 %v295
        %v333 = vunpack.c.l.b16 %v296
        %v334 = vpack.c.b16 %v319, %v318
        %v335 = vpack.c.b16 %v321, %v320
        %v336 = vpack.c.b16 %v323, %v322
        %v337 = vpack.c.b16 %v325, %v324
        %v338 = vpack.c.b16 %v327, %v326
        %v339 = vpack.c.b16 %v329, %v328
        %v340 = vpack.c.b16 %v331, %v330
        %v341 = vpack.c.b16 %v333, %v332
        %vm342 = vcmask 64512
        %v344 = vsel %vm342, %v334, 0
        %v347 = vsel %vm342, %v335, 0
        %v350 = vsel %vm342, %v336, 0
        %v353 = vsel %vm342, %v337, 0
        %v356 = vsel %vm342, %v338, 0
        %v359 = vsel %vm342, %v339, 0
        %v362 = vsel %vm342, %v340, 0
        %v365 = vsel %vm342, %v341, 0
        %vm367 = vcmask 1043456
        %v369 = vsel %vm367, %v297, 0
        %371 = vmatpush.bf16.msra.mxu0 0
        %372 = vmatpush.bf16.msra.mxu0 0
        %373 = vmatpush.bf16.msra.mxu0 0
        %374 = vmatpush.bf16.msra.mxu0 0
        %375 = vmatpush.bf16.msra.mxu0 0
        %376 = vmatpush.bf16.msra.mxu0 0
        %377 = vmatpush.bf16.msra.mxu0 0
        %378 = vmatpush.bf16.msra.mxu0 %v369
        %379 = vmatmul.bf16.gmra.mxu0 %v344
        %v380 = vpop.f32.mrf.mxu0
        %v381 = vadd.f32 %v300, %v380
        %v382 = vpop.f32.mrf.mxu0
        %v383 = vadd.f32 %v300, %v382
        %384 = vmatmul.bf16.gmra.mxu0 %v347
        %v385 = vpop.f32.mrf.mxu0
        %v386 = vadd.f32 %v300, %v385
        %v387 = vpop.f32.mrf.mxu0
        %v388 = vadd.f32 %v300, %v387
        %389 = vmatmul.bf16.gmra.mxu0 %v350
        %v390 = vpop.f32.mrf.mxu0
        %v391 = vadd.f32 %v300, %v390
        %v392 = vpop.f32.mrf.mxu0
        %v393 = vadd.f32 %v300, %v392
        %394 = vmatmul.bf16.gmra.mxu0 %v353
        %v395 = vpop.f32.mrf.mxu0
        %v396 = vadd.f32 %v300, %v395
        %v397 = vpop.f32.mrf.mxu0
        %v398 = vadd.f32 %v300, %v397
        %399 = vmatmul.bf16.gmra.mxu0 %v356
        %v400 = vpop.f32.mrf.mxu0
        %v401 = vadd.f32 %v300, %v400
        %v402 = vpop.f32.mrf.mxu0
        %v403 = vadd.f32 %v300, %v402
        %404 = vmatmul.bf16.gmra.mxu0 %v359
        %v405 = vpop.f32.mrf.mxu0
        %v406 = vadd.f32 %v300, %v405
        %v407 = vpop.f32.mrf.mxu0
        %v408 = vadd.f32 %v300, %v407
        %409 = vmatmul.bf16.gmra.mxu0 %v362
        %v410 = vpop.f32.mrf.mxu0
        %v411 = vadd.f32 %v300, %v410
        %v412 = vpop.f32.mrf.mxu0
        %v413 = vadd.f32 %v300, %v412
        %414 = vmatmul.bf16.gmra.mxu0 %v365
        %v415 = vpop.f32.mrf.mxu0
        %v416 = vadd.f32 %v300, %v415
        %v417 = vpop.f32.mrf.mxu0
        %v418 = vadd.f32 %v300, %v417
        %419 = vdwg.mxu0
        %v420 = vmax.f32 %v381, 0.0
        %v421 = vmax.f32 %v383, 0.0
        %v422 = vmax.f32 %v386, 0.0
        %v423 = vmax.f32 %v388, 0.0
        %v424 = vmax.f32 %v391, 0.0
        %v425 = vmax.f32 %v393, 0.0
        %v426 = vmax.f32 %v396, 0.0
        %v427 = vmax.f32 %v398, 0.0
        %v428 = vmax.f32 %v401, 0.0
        %v429 = vmax.f32 %v403, 0.0
        %v430 = vmax.f32 %v406, 0.0
        %v431 = vmax.f32 %v408, 0.0
        %v432 = vmax.f32 %v411, 0.0
        %v433 = vmax.f32 %v413, 0.0
        %v434 = vmax.f32 %v416, 0.0
        %v435 = vmax.f32 %v418, 0.0
        %v436 = vpack.c.bf16 %v421, %v420
        %v437 = vpack.c.bf16 %v423, %v422
        %v438 = vpack.c.bf16 %v425, %v424
        %v439 = vpack.c.bf16 %v427, %v426
        %v440 = vpack.c.bf16 %v429, %v428
        %v441 = vpack.c.bf16 %v431, %v430
        %v442 = vpack.c.bf16 %v433, %v432
        %v443 = vpack.c.bf16 %v435, %v434
        %v444 = vld [vmem:[%s3] sm:$0xf]
        %v445 = vld [vmem:[%s3 + $0x4] sm:$0xf]
        %v446 = vld [vmem:[%s3 + $0x8] sm:$0xf]
        %v447 = vld [vmem:[%s3 + $0xc] sm:$0xf]
        %v448 = vld [vmem:[%s3 + $0x10] sm:$0xf]
        %v449 = vld [vmem:[%s3 + $0x14] sm:$0xf]
        %v450 = vld [vmem:[%s3 + $0x18] sm:$0xf]
        %v451 = vld [vmem:[%s3 + $0x1c] sm:$0xf]
        %v452 = vld [vmem:[%s3 + $0x20] sm:$0xf]
        %v453 = vld [vmem:[%s3 + $0x24] sm:$0xf]
        %v454 = vld [vmem:[%s3 + $0x28] sm:$0xf]
        %v455 = vld [vmem:[%s3 + $0x2c] sm:$0xf]
        %v456 = vld [vmem:[%s3 + $0x30] sm:$0xf]
        %v457 = vld [vmem:[%s3 + $0x34] sm:$0xf]
        %v458 = vld [vmem:[%s3 + $0x38] sm:$0xf]
        %v459 = vld [vmem:[%s3 + $0x3c] sm:$0xf]
        %v460 = vld [vmem:[%s4] sm:$0x1]
        %v462 = vperm.slane %v460, 0
        %v480 = vunpack.c.l.b16 %v444
        %v481 = vunpack.c.l.b16 %v445
        %v482 = vunpack.c.l.b16 %v446
        %v483 = vunpack.c.l.b16 %v447
        %v484 = vunpack.c.l.b16 %v448
        %v485 = vunpack.c.l.b16 %v449
        %v486 = vunpack.c.l.b16 %v450
        %v487 = vunpack.c.l.b16 %v451
        %v488 = vunpack.c.l.b16 %v452
        %v489 = vunpack.c.l.b16 %v453
        %v490 = vunpack.c.l.b16 %v454
        %v491 = vunpack.c.l.b16 %v455
        %v492 = vunpack.c.l.b16 %v456
        %v493 = vunpack.c.l.b16 %v457
        %v494 = vunpack.c.l.b16 %v458
        %v495 = vunpack.c.l.b16 %v459
        %v496 = vpack.c.b16 %v481, %v480
        %v497 = vpack.c.b16 %v483, %v482
        %v498 = vpack.c.b16 %v485, %v484
        %v499 = vpack.c.b16 %v487, %v486
        %v500 = vpack.c.b16 %v489, %v488
        %v501 = vpack.c.b16 %v491, %v490
        %v502 = vpack.c.b16 %v493, %v492
        %v503 = vpack.c.b16 %v495, %v494
        %512 = vmatpush.bf16.msra.mxu0 %v503
        %513 = vmatpush.bf16.msra.mxu0 %v502
        %514 = vmatpush.bf16.msra.mxu0 %v501
        %515 = vmatpush.bf16.msra.mxu0 %v500
        %516 = vmatpush.bf16.msra.mxu0 %v499
        %517 = vmatpush.bf16.msra.mxu0 %v498
        %518 = vmatpush.bf16.msra.mxu0 %v497
        %519 = vmatpush.bf16.msra.mxu0 %v496
        %520 = vmatmul.bf16.gmra.mxu0 %v436
        %v521 = vpop.f32.mrf.mxu0
        %v522 = vadd.f32 %v462, %v521
        %v523 = vpop.f32.mrf.mxu0
        %v524 = vadd.f32 %v462, %v523
        %525 = vmatmul.bf16.gmra.mxu0 %v437
        %v526 = vpop.f32.mrf.mxu0
        %v527 = vadd.f32 %v462, %v526
        %v528 = vpop.f32.mrf.mxu0
        %v529 = vadd.f32 %v462, %v528
        %530 = vmatmul.bf16.gmra.mxu0 %v438
        %v531 = vpop.f32.mrf.mxu0
        %v532 = vadd.f32 %v462, %v531
        %v533 = vpop.f32.mrf.mxu0
        %v534 = vadd.f32 %v462, %v533
        %535 = vmatmul.bf16.gmra.mxu0 %v439
        %v536 = vpop.f32.mrf.mxu0
        %v537 = vadd.f32 %v462, %v536
        %v538 = vpop.f32.mrf.mxu0
        %v539 = vadd.f32 %v462, %v538
        %540 = vmatmul.bf16.gmra.mxu0 %v440
        %v541 = vpop.f32.mrf.mxu0
        %v542 = vadd.f32 %v462, %v541
        %v543 = vpop.f32.mrf.mxu0
        %v544 = vadd.f32 %v462, %v543
        %545 = vmatmul.bf16.gmra.mxu0 %v441
        %v546 = vpop.f32.mrf.mxu0
        %v547 = vadd.f32 %v462, %v546
        %v548 = vpop.f32.mrf.mxu0
        %v549 = vadd.f32 %v462, %v548
        %550 = vmatmul.bf16.gmra.mxu0 %v442
        %v551 = vpop.f32.mrf.mxu0
        %v552 = vadd.f32 %v462, %v551
        %v553 = vpop.f32.mrf.mxu0
        %v554 = vadd.f32 %v462, %v553
        %555 = vmatmul.bf16.gmra.mxu0 %v443
        %v556 = vpop.f32.mrf.mxu0
        %v557 = vadd.f32 %v462, %v556
        %v558 = vpop.f32.mrf.mxu0
        %v559 = vadd.f32 %v462, %v558
        %560 = vdwg.mxu0
        %v561 = vmax.f32 %v522, 0.0
        %v562 = vmax.f32 %v524, 0.0
        %v563 = vmax.f32 %v527, 0.0
        %v564 = vmax.f32 %v529, 0.0
        %v565 = vmax.f32 %v532, 0.0
        %v566 = vmax.f32 %v534, 0.0
        %v567 = vmax.f32 %v537, 0.0
        %v568 = vmax.f32 %v539, 0.0
        %v569 = vmax.f32 %v542, 0.0
        %v570 = vmax.f32 %v544, 0.0
        %v571 = vmax.f32 %v547, 0.0
        %v572 = vmax.f32 %v549, 0.0
        %v573 = vmax.f32 %v552, 0.0
        %v574 = vmax.f32 %v554, 0.0
        %v575 = vmax.f32 %v557, 0.0
        %v576 = vmax.f32 %v559, 0.0
        %v577 = vpack.c.bf16 %v562, %v561
        %v578 = vpack.c.bf16 %v564, %v563
        %v579 = vpack.c.bf16 %v566, %v565
        %v580 = vpack.c.bf16 %v568, %v567
        %v581 = vpack.c.bf16 %v570, %v569
        %v582 = vpack.c.bf16 %v572, %v571
        %v583 = vpack.c.bf16 %v574, %v573
        %v584 = vpack.c.bf16 %v576, %v575
        %v585 = vld [vmem:[%s5] sm:$0xf]
        %v586 = vld [vmem:[%s5 + $0x4] sm:$0xf]
        %v587 = vld [vmem:[%s5 + $0x8] sm:$0xf]
        %v588 = vld [vmem:[%s5 + $0xc] sm:$0xf]
        %v589 = vld [vmem:[%s5 + $0x10] sm:$0xf]
        %v590 = vld [vmem:[%s5 + $0x14] sm:$0xf]
        %v591 = vld [vmem:[%s5 + $0x18] sm:$0xf]
        %v592 = vld [vmem:[%s5 + $0x1c] sm:$0xf]
        %v593 = vld [vmem:[%s5 + $0x20] sm:$0xf]
        %v594 = vld [vmem:[%s5 + $0x24] sm:$0xf]
        %v595 = vld [vmem:[%s5 + $0x28] sm:$0xf]
        %v596 = vld [vmem:[%s5 + $0x2c] sm:$0xf]
        %v597 = vld [vmem:[%s5 + $0x30] sm:$0xf]
        %v598 = vld [vmem:[%s5 + $0x34] sm:$0xf]
        %v599 = vld [vmem:[%s5 + $0x38] sm:$0xf]
        %v600 = vld [vmem:[%s5 + $0x3c] sm:$0xf]
        %v601 = vld [vmem:[%s6] sm:$0x1]
        %v603 = vperm.slane %v601, 0
        %v621 = vunpack.c.l.b16 %v585
        %v622 = vunpack.c.l.b16 %v586
        %v623 = vunpack.c.l.b16 %v587
        %v624 = vunpack.c.l.b16 %v588
        %v625 = vunpack.c.l.b16 %v589
        %v626 = vunpack.c.l.b16 %v590
        %v627 = vunpack.c.l.b16 %v591
        %v628 = vunpack.c.l.b16 %v592
        %v629 = vunpack.c.l.b16 %v593
        %v630 = vunpack.c.l.b16 %v594
        %v631 = vunpack.c.l.b16 %v595
        %v632 = vunpack.c.l.b16 %v596
        %v633 = vunpack.c.l.b16 %v597
        %v634 = vunpack.c.l.b16 %v598
        %v635 = vunpack.c.l.b16 %v599
        %v636 = vunpack.c.l.b16 %v600
        %v637 = vpack.c.b16 %v622, %v621
        %v638 = vpack.c.b16 %v624, %v623
        %v639 = vpack.c.b16 %v626, %v625
        %v640 = vpack.c.b16 %v628, %v627
        %v641 = vpack.c.b16 %v630, %v629
        %v642 = vpack.c.b16 %v632, %v631
        %v643 = vpack.c.b16 %v634, %v633
        %v644 = vpack.c.b16 %v636, %v635
        %653 = vmatpush.bf16.msra.mxu0 %v644
        %654 = vmatpush.bf16.msra.mxu0 %v643
        %655 = vmatpush.bf16.msra.mxu0 %v642
        %656 = vmatpush.bf16.msra.mxu0 %v641
        %657 = vmatpush.bf16.msra.mxu0 %v640
        %658 = vmatpush.bf16.msra.mxu0 %v639
        %659 = vmatpush.bf16.msra.mxu0 %v638
        %660 = vmatpush.bf16.msra.mxu0 %v637
        %661 = vmatmul.bf16.gmra.mxu0 %v577
        %v662 = vpop.f32.mrf.mxu0
        %v663 = vadd.f32 %v603, %v662
        %v664 = vpop.f32.mrf.mxu0
        %v665 = vadd.f32 %v603, %v664
        %666 = vmatmul.bf16.gmra.mxu0 %v578
        %v667 = vpop.f32.mrf.mxu0
        %v668 = vadd.f32 %v603, %v667
        %v669 = vpop.f32.mrf.mxu0
        %v670 = vadd.f32 %v603, %v669
        %671 = vmatmul.bf16.gmra.mxu0 %v579
        %v672 = vpop.f32.mrf.mxu0
        %v673 = vadd.f32 %v603, %v672
        %v674 = vpop.f32.mrf.mxu0
        %v675 = vadd.f32 %v603, %v674
        %676 = vmatmul.bf16.gmra.mxu0 %v580
        %v677 = vpop.f32.mrf.mxu0
        %v678 = vadd.f32 %v603, %v677
        %v679 = vpop.f32.mrf.mxu0
        %v680 = vadd.f32 %v603, %v679
        %681 = vmatmul.bf16.gmra.mxu0 %v581
        %v682 = vpop.f32.mrf.mxu0
        %v683 = vadd.f32 %v603, %v682
        %v684 = vpop.f32.mrf.mxu0
        %v685 = vadd.f32 %v603, %v684
        %686 = vmatmul.bf16.gmra.mxu0 %v582
        %v687 = vpop.f32.mrf.mxu0
        %v688 = vadd.f32 %v603, %v687
        %v689 = vpop.f32.mrf.mxu0
        %v690 = vadd.f32 %v603, %v689
        %691 = vmatmul.bf16.gmra.mxu0 %v583
        %v692 = vpop.f32.mrf.mxu0
        %v693 = vadd.f32 %v603, %v692
        %v694 = vpop.f32.mrf.mxu0
        %v695 = vadd.f32 %v603, %v694
        %696 = vmatmul.bf16.gmra.mxu0 %v584
        %v697 = vpop.f32.mrf.mxu0
        %v698 = vadd.f32 %v603, %v697
        %v699 = vpop.f32.mrf.mxu0
        %v700 = vadd.f32 %v603, %v699
        %701 = vdwg.mxu0
        %v702 = vpack.c.bf16 %v663, %v663
        %v703 = vpack.c.bf16 %v665, %v665
        %v704 = vpack.c.bf16 %v668, %v668
        %v705 = vpack.c.bf16 %v670, %v670
        %v706 = vpack.c.bf16 %v673, %v673
        %v707 = vpack.c.bf16 %v675, %v675
        %v708 = vpack.c.bf16 %v678, %v678
        %v709 = vpack.c.bf16 %v680, %v680
        %v710 = vpack.c.bf16 %v683, %v683
        %v711 = vpack.c.bf16 %v685, %v685
        %v712 = vpack.c.bf16 %v688, %v688
        %v713 = vpack.c.bf16 %v690, %v690
        %v714 = vpack.c.bf16 %v693, %v693
        %v715 = vpack.c.bf16 %v695, %v695
        %v716 = vpack.c.bf16 %v698, %v698
        %v717 = vpack.c.bf16 %v700, %v700
        %718 = vst [vmem:[%s272] sm:$0xf] %v702
        %719 = vst [vmem:[%s272 + $0x4] sm:$0xf] %v703
        %720 = vst [vmem:[%s272 + $0x8] sm:$0xf] %v704
        %721 = vst [vmem:[%s272 + $0xc] sm:$0xf] %v705
        %722 = vst [vmem:[%s272 + $0x10] sm:$0xf] %v706
        %723 = vst [vmem:[%s272 + $0x14] sm:$0xf] %v707
        %724 = vst [vmem:[%s272 + $0x18] sm:$0xf] %v708
        %725 = vst [vmem:[%s272 + $0x1c] sm:$0xf] %v709
        %726 = vst [vmem:[%s272 + $0x20] sm:$0xf] %v710
        %727 = vst [vmem:[%s272 + $0x24] sm:$0xf] %v711
        %728 = vst [vmem:[%s272 + $0x28] sm:$0xf] %v712
        %729 = vst [vmem:[%s272 + $0x2c] sm:$0xf] %v713
        %730 = vst [vmem:[%s272 + $0x30] sm:$0xf] %v714
        %731 = vst [vmem:[%s272 + $0x34] sm:$0xf] %v715
        %732 = vst [vmem:[%s272 + $0x38] sm:$0xf] %v716
        %733 = vst [vmem:[%s272 + $0x3c] sm:$0xf] %v717
        %s734 = sand.u32 %s181, 1
        %s735 = scalar_lea.sflag [#allocation3], %s734
        %s736 = sand.u32 %s181, 1
        %s737 = smul.addr %s736, 64
        %s738 = scalar_lea.vmem [#allocation2], %s737
        // Predicated region
        $region49: #{tpu_custom_call.1} parent=47 // pred_check
          %p739 = pneg %p191
        $region50: #{tpu_custom_call.1} parent=47 // pred_check_branch
          %741 = sbr.rel (%p739) target = $region52
        $region51: #{tpu_custom_call.1} parent=47 // pred_region
          %s742 = smul.u32 16, %s21
          %744 = vsyncadd %s735, 0
          %s745 = smul.addr %s742, 4
          %s746 = scalar_lea.hbm %s7, %s745
          %s747 = sshll.u32 %s738, 4
          %s748 = int_to_ptr.vmem [resolvable:$true] %s747
          %s749 = sshll.u32 %s746, 4
          %s750 = int_to_ptr.hbm [resolvable:$true] %s749
          %755 = dma.vmem_to_hbm [thread:$0]  %s748, 1024, %s750, %s735, 64, 64, 4
        $region52: #{tpu_custom_call.1} parent=47 // pred_fallthru
          _
      $region48: #{tpu_custom_call.1} parent=5 // pred_fallthru
        _
      %p756 = scmp.le.s32.totalorder 2, %s16
      // Predicated region
      $region53: #{tpu_custom_call.1} parent=5 // pred_check
        %p757 = pneg %p756
      $region54: #{tpu_custom_call.1} parent=5 // pred_check_branch
        %759 = sbr.rel (%p757) target = $region56
      $region55: #{tpu_custom_call.1} parent=5 // pred_region
        %s760 = ssub.s32 %s16, 2
        // Predicated region
        $region57: #{tpu_custom_call.1} parent=55 // pred_check
          %p761 = pneg %p197
        $region58: #{tpu_custom_call.1} parent=55 // pred_check_branch
          %763 = sbr.rel (%p761) target = $region60
        $region59: #{tpu_custom_call.1} parent=55 // pred_region
          %s764 = sand.u32 %s182, 1
          %s765 = scalar_lea.sflag [#allocation3], %s764
          %s766 = sand.u32 %s182, 1
          %s767 = smul.addr %s766, 64
          %s768 = scalar_lea.vmem [#allocation2], %s767
          %770 = dma.done %s765, 1024
        $region60: #{tpu_custom_call.1} parent=55 // pred_fallthru
          _
      $region56: #{tpu_custom_call.1} parent=5 // pred_fallthru
        _
    $region6: #{tpu_custom_call.1} parent=1 // loop_footer
      %s20 = sadd.s32 1, %s16
    $region7: #{tpu_custom_call.1} parent=1 // loop_footer_branch
      %15 = sbr.rel target = $region3
    $region8: #{tpu_custom_call.1} parent=1 // loop_exit
      _
    %771 = vsyncpa [#allocation3], 1
    %s772 = scalar_lea.sflag [#allocation3], 1
    %773 = vsyncpa %s772, 1

</llo_original>
